<compile_context>
chip_gen: v5e
topology: v5e:2x2
jax: 0.10.0
libtpu: 0.0.40
codegen_flags: <defaults>
</compile_context>

<pallas_src>
import functools

import jax
import jax.numpy as jnp
from jax.experimental import pallas as pl
from jax.experimental.pallas import tpu as pltpu


# ---------------------------------------------------------------------------
# Kernel
# ---------------------------------------------------------------------------
def _spp_kernel(x_ref, halo_ref, w_ref, b_ref, o_ref, *,
                pool_sizes, width, tile_h, halo_rows, p_slab,
                fuse_k, use_xlu_roll, compute_dtype):
    """One (batch, H-tile) band per grid step, NCHW with flattened spatial dim.

    x_ref:    (1, C_in, tile_h*W)            band of the input image
    halo_ref: (1, 1, C_in, 2*halo_rows*W)    rows above/below the band (-inf at borders)
    w_ref:    (C_out, num_feats*C_in)        BN-folded 1x1-conv weight
    b_ref:    (C_out, 1)                     folded BN bias
    o_ref:    (1, C_out, tile_h*W)           output band (lane-dense store)
    """
    cdt = compute_dtype
    w_lanes = width
    p_tile = tile_h * w_lanes
    p_rows = (tile_h + 2 * halo_rows) * w_lanes      # valid lanes of the slab
    lane_pad = p_slab - p_rows
    neg = jnp.array(-jnp.inf, dtype=cdt)

    tile = x_ref[0].astype(cdt)                      # (C_in, p_tile)
    halo = halo_ref[0, 0].astype(cdt)                # (C_in, 2*halo_rows*W)
    c_in = tile.shape[0]

    # Haloed slab, assembled once per grid step (lane width padded to 128s so
    # the XLU rotations below always see an aligned operand).
    pieces = [halo[:, : halo_rows * w_lanes], tile, halo[:, halo_rows * w_lanes:]]
    if lane_pad:
        pieces.append(jnp.full((c_in, lane_pad), -jnp.inf, cdt))
    slab = jnp.concatenate(pieces, axis=1)           # (C_in, p_slab)

    # Hoisted row-edge masks for the horizontal +-1 shifts.
    col = jax.lax.broadcasted_iota(jnp.int32, (1, p_slab), 1) % w_lanes
    ok_r = col < (w_lanes - 1)
    ok_l = col > 0
    fill_row = None if use_xlu_roll else jnp.full((c_in, w_lanes), -jnp.inf, cdt)

    def pool3(a):
        # Vertical 3-max: whole rows move by `width` lanes.  pltpu.roll is an
        # XLU rotate (no VMEM copy); wrap-around only ever lands in halo rows /
        # the -inf lane padding, never in the tile interior, so no mask is
        # needed and the rotate direction is irrelevant (max of both sides).
        if use_xlu_roll:
            dn = pltpu.roll(a, p_slab - w_lanes, axis=1)
            up = pltpu.roll(a, w_lanes, axis=1)
        else:  # conservative fallback (always lowers): shift with -inf fill
            dn = jnp.concatenate([a[:, w_lanes:], fill_row], axis=1)
            up = jnp.concatenate([fill_row, a[:, : p_slab - w_lanes]], axis=1)
        r = jnp.maximum(a, jnp.maximum(dn, up))
        # Horizontal 3-max: +-1 lane shift; cross-row wrap killed by the mask.
        rt = jnp.where(ok_r, jnp.roll(r, -1, axis=1), neg)
        lf = jnp.where(ok_l, jnp.roll(r, 1, axis=1), neg)
        return jnp.maximum(r, jnp.maximum(rt, lf))

    # SPPF cascade: repeated 3x3 stride-1 max pools == 5x5, 7x7, ... pools.
    lo = halo_rows * w_lanes
    branches = [tile]                                # identity branch
    pooled = slab
    window = 1
    for s in pool_sizes:
        for _ in range((s - window) // 2):
            pooled = pool3(pooled)
        window = s
        branches.append(pooled[:, lo:lo + p_tile])   # central tile_h rows

    if fuse_k:
        # One big-K MXU contraction over all branches (K = num_feats * C_in).
        feats = jnp.concatenate(branches, axis=0)    # (num_feats*C_in, p_tile)
        acc = jnp.dot(w_ref[...], feats, preferred_element_type=jnp.float32)
    else:
        # Per-branch dots (used only when C_in does not fill whole sublane tiles).
        acc = jnp.zeros((w_ref.shape[0], p_tile), jnp.float32)
        for k, feat in enumerate(branches):
            acc = acc + jnp.dot(w_ref[:, k * c_in:(k + 1) * c_in], feat,
                                preferred_element_type=jnp.float32)

    acc = acc + b_ref[...]                           # folded BN bias
    acc = acc * jax.nn.sigmoid(acc)                  # SiLU
    o_ref[0] = acc.astype(o_ref.dtype)
    # TODO(synk): on v7x a VMEM-tighter alternative to the fused-K dot is explicit
    #             MRB accumulation via pltpu.matmul_push_rhs/acc_lhs/pop per branch.


# ---------------------------------------------------------------------------
# Host-side helpers
# ---------------------------------------------------------------------------
def _vmem_limit_bytes():
    """Generation-aware VMEM budget: half of physical VMEM, capped at 64 MiB."""
    try:
        cap = pltpu.get_tpu_info().vmem_capacity_bytes
    except Exception:
        cap = 64 * 1024 * 1024
    return int(min(cap // 2, 64 * 1024 * 1024))


def _default_compute_dtype():
    """bf16 pooling only where the VPU has bf16 VALU (v6e/v7x); f32 elsewhere."""
    try:
        kind = jax.devices()[0].device_kind.lower()
    except Exception:
        return jnp.float32
    return jnp.bfloat16 if ("v6" in kind or "v7" in kind) else jnp.float32


def _choose_tile_h(H, W, C_in, halo_rows, itemsize):
    """Smallest H-tile that divides H, keeps blocks 128-lane aligned, covers the
    pooling halo and keeps the per-step slab small; falls back to the full H."""
    for t in range(1, H):
        if H % t:
            continue
        if (t * W) % 128:
            continue
        if t < 2 * halo_rows:                 # bound halo overhead; host slicing valid
            continue
        if C_in * (t + 2 * halo_rows) * W * itemsize > (4 << 20):
            continue
        return t
    return H


# ---------------------------------------------------------------------------
# Forward wrapper
# ---------------------------------------------------------------------------
def spp_forward(x_nchw, w, bn_gamma, bn_beta, bn_mean, bn_var, pool_sizes,
                eps=1e-5, compute_dtype=None, out_dtype=None, tile_h=None):
    """SPP forward. x_nchw: (N, C_in, H, W); w: (C_out, C_in*(1+len(pool_sizes)), 1, 1)."""
    N, C_in, H, W = x_nchw.shape
    pool_sizes = tuple(int(s) for s in pool_sizes)
    num_feats = 1 + len(pool_sizes)
    C_out, C_total = int(w.shape[0]), int(w.shape[1])
    assert C_total == C_in * num_feats, "ch_in of Conv must equal C*(1+len(pool_size))"
    # TODO(synk): only k=1 is implemented for the trailing Conv (the module default);
    #             a general k would need an im2col-style matmul.
    assert w.shape[2] == 1 and w.shape[3] == 1
    prev = 1
    for s in pool_sizes:
        assert s % 2 == 1 and s >= prev, "pool sizes must be odd and non-decreasing"
        prev = s
    assert jnp.issubdtype(x_nchw.dtype, jnp.floating)

    if compute_dtype is None:
        compute_dtype = _default_compute_dtype()
    if out_dtype is None:
        out_dtype = x_nchw.dtype
    itemsize = jnp.dtype(compute_dtype).itemsize

    halo_rows = max(1, max(pool_sizes) // 2)
    if tile_h is None:
        tile_h = _choose_tile_h(H, W, C_in, halo_rows, itemsize)
    assert H % tile_h == 0
    n_h = H // tile_h
    if n_h > 1:
        assert (tile_h * W) % 128 == 0, "tile_h*W must be a multiple of 128 when H-tiling"
        assert tile_h >= halo_rows, "tile_h must cover the pooling halo"
    p_tile = tile_h * W
    p_rows = (tile_h + 2 * halo_rows) * W
    p_slab = ((p_rows + 127) // 128) * 128

    # Fold eval-mode BatchNorm into the 1x1-conv weight; only the bias survives.
    scale = bn_gamma / jnp.sqrt(bn_var + eps)
    bias = (bn_beta - bn_mean * scale).reshape(C_out, 1).astype(jnp.float32)
    w2 = (w[:, :, 0, 0] * scale[:, None]).astype(compute_dtype)   # (C_out, C_total)

    # Input stays NCHW in its original dtype; the flatten is free.
    x_flat = x_nchw.reshape(N, C_in, H * W)

    # Per-tile halo rows (rows from neighbouring tiles, -inf at image borders).
    # A tiny auxiliary input (~2*halo/tile_h of x) so haloed tiles stay
    # expressible with plain blocked BlockSpecs and remain auto-pipelined.
    if n_h == 1:
        halos = jnp.full((N, 1, C_in, 2 * halo_rows * W), -jnp.inf, x_nchw.dtype)
    else:
        xr = x_nchw.reshape(N, C_in, n_h, tile_h, W)
        ninf = jnp.full((N, C_in, 1, halo_rows, W), -jnp.inf, x_nchw.dtype)
        top = jnp.concatenate([ninf, xr[:, :, :-1, tile_h - halo_rows:, :]], axis=2)
        bot = jnp.concatenate([xr[:, :, 1:, :halo_rows, :], ninf], axis=2)
        halos = jnp.concatenate([top, bot], axis=3)              # (N,C,n_h,2*halo,W)
        halos = halos.transpose(0, 2, 1, 3, 4).reshape(N, n_h, C_in, 2 * halo_rows * W)

    # The fused big-K matmul stages branches contiguously along sublanes; require
    # each branch to fill whole (packed) sublane tiles, otherwise fall back.
    sublane_rows = 8 * (4 // itemsize)
    fuse_ok = (C_in % sublane_rows == 0)

    def _call(use_xlu_roll, fuse_k):
        kernel = functools.partial(
            _spp_kernel, pool_sizes=pool_sizes, width=W, tile_h=tile_h,
            halo_rows=halo_rows, p_slab=p_slab, fuse_k=fuse_k,
            use_xlu_roll=use_xlu_roll, compute_dtype=compute_dtype)
        return pl.pallas_call(
            kernel,
            out_shape=jax.ShapeDtypeStruct((N, C_out, H * W), out_dtype),
            grid_spec=pltpu.PrefetchScalarGridSpec(
                num_scalar_prefetch=0,
                grid=(N, n_h),
                in_specs=[
                    pl.BlockSpec((1, C_in, p_tile), lambda n, h: (n, 0, h)),
                    pl.BlockSpec((1, 1, C_in, 2 * halo_rows * W),
                                 lambda n, h: (n, h, 0, 0)),
                    # Weight / bias: constant block index -> stay resident across the grid.
                    pl.BlockSpec((C_out, C_total), lambda n, h: (0, 0)),
                    pl.BlockSpec((C_out, 1), lambda n, h: (0, 0)),
                ],
                out_specs=pl.BlockSpec((1, C_out, p_tile), lambda n, h: (n, 0, h)),
            ),
            compiler_params=pltpu.CompilerParams(
                # Both axes independent -> megacore can shard either one (v7x: 2 TCs).
                dimension_semantics=("parallel", "parallel"),
                vmem_limit_bytes=_vmem_limit_bytes(),
            ),
        )(x_flat, halos, w2, bias)

    try:
        out = _call(True, fuse_ok)
    except Exception:
        # Conservative fallback (previously-validated formulation) if the XLU
        # rotate / fused-K staging is rejected by an older Mosaic toolchain.
        out = _call(False, False)
    return out.reshape(N, C_out, H, W)


# ---------------------------------------------------------------------------
# Pure-JAX reference (mirrors the PyTorch module, eval-mode BN)
# ---------------------------------------------------------------------------
def _reference(x, w, gamma, beta, mean, var, pool_sizes, eps=1e-5):
    outs = [x]
    for s in pool_sizes:
        p = s // 2
        pooled = jax.lax.reduce_window(
            x, -jnp.inf, jax.lax.max,
            window_dimensions=(1, 1, s, s),
            window_strides=(1, 1, 1, 1),
            padding=[(0, 0), (0, 0), (p, p), (p, p)])
        outs.append(pooled)
    y = jnp.concatenate(outs, axis=1)
    yc = jnp.einsum('nchw,oc->nohw', y, w[:, :, 0, 0])
    scale = gamma / jnp.sqrt(var + eps)
    bias = beta - mean * scale
    yc = yc * scale[None, :, None, None] + bias[None, :, None, None]
    return yc * jax.nn.sigmoid(yc)


if __name__ == "__main__":
    key = jax.random.PRNGKey(0)
    k1, k2, k3, k4, k5, k6 = jax.random.split(key, 6)

    N, C, H, W = 2, 16, 16, 16
    pool_sizes = (3, 5, 7)
    C_total = C * (1 + len(pool_sizes))      # ch_in of the trailing Conv = 64
    C_out = 16

    x = jax.random.normal(k1, (N, C, H, W), jnp.float32)
    w = 0.1 * jax.random.normal(k2, (C_out, C_total, 1, 1), jnp.float32)
    bn_gamma = 0.5 + jax.random.uniform(k3, (C_out,), jnp.float32)
    bn_beta = 0.1 * jax.random.normal(k4, (C_out,), jnp.float32)
    bn_mean = 0.1 * jax.random.normal(k5, (C_out,), jnp.float32)
    bn_var = 0.5 + jax.random.uniform(k6, (C_out,), jnp.float32)

    ref = _reference(x, w, bn_gamma, bn_beta, bn_mean, bn_var, pool_sizes)

    # 1) f32 compute, H-tiled path (2 bands per image, halo exchange exercised).
    out1 = spp_forward(x, w, bn_gamma, bn_beta, bn_mean, bn_var, pool_sizes,
                       compute_dtype=jnp.float32, tile_h=8)
    out1 = jax.block_until_ready(out1)
    assert out1.shape == (N, C_out, H, W)
    assert jnp.allclose(out1, ref, atol=1e-3, rtol=1e-3)

    # 2) f32 compute, single-band path (whole image per step, -inf border halos).
    out2 = spp_forward(x, w, bn_gamma, bn_beta, bn_mean, bn_var, pool_sizes,
                       compute_dtype=jnp.float32, tile_h=16)
    out2 = jax.block_until_ready(out2)
    assert jnp.allclose(out2, ref, atol=1e-3, rtol=1e-3)

    # 3) bf16 pooling + bf16 MXU operands + bf16 output (v6e/v7x configuration).
    out3 = spp_forward(x, w, bn_gamma, bn_beta, bn_mean, bn_var, pool_sizes,
                       compute_dtype=jnp.bfloat16, out_dtype=jnp.bfloat16, tile_h=8)
    out3 = jax.block_until_ready(out3)
    assert out3.dtype == jnp.bfloat16
    assert jnp.allclose(out3.astype(jnp.float32), ref, atol=1e-1, rtol=1e-1)

    print("KERNEL_OK")
</pallas_src>

<mosaic_0001>
module attributes {stable_mosaic.version = 11 : i64} {
  func.func @_spp_kernel(%arg0: i32, %arg1: i32, %arg2: memref<1x16x128xf32, #tpu.memory_space<vmem>>, %arg3: memref<1x1x16x96xf32, #tpu.memory_space<vmem>>, %arg4: memref<16x64xf32, #tpu.memory_space<vmem>>, %arg5: memref<16x1xf32, #tpu.memory_space<vmem>>, %arg6: memref<1x16x128xf32, #tpu.memory_space<vmem>>) attributes {dimension_semantics = [#tpu.dimension_semantics<parallel>, #tpu.dimension_semantics<parallel>], iteration_bounds = array<i64: 2, 2>, scalar_prefetch = 0 : i64, scratch_operands = 0 : i64, tpu.core_type = #tpu.core_type<tc>, window_params = [{transform_indices = @transform_0, window_bounds = array<i64: 1, 16, 128>}, {transform_indices = @transform_1, window_bounds = array<i64: 1, 1, 16, 96>}, {pipeline_mode = #tpu.pipeline_mode<synchronous>, transform_indices = @transform_2, window_bounds = array<i64: 16, 64>}, {pipeline_mode = #tpu.pipeline_mode<synchronous>, transform_indices = @transform_3, window_bounds = array<i64: 16, 1>}, {transform_indices = @transform_4, window_bounds = array<i64: 1, 16, 128>}]} {
    %c0 = arith.constant 0 : index
    %c0_0 = arith.constant 0 : index
    %c0_1 = arith.constant 0 : index
    %0 = vector.load %arg2[%c0, %c0_0, %c0_1] : memref<1x16x128xf32, #tpu.memory_space<vmem>>, vector<1x16x128xf32>
    %1 = vector.shape_cast %0 : vector<1x16x128xf32> to vector<16x128xf32>
    %c0_2 = arith.constant 0 : index
    %c0_3 = arith.constant 0 : index
    %c0_4 = arith.constant 0 : index
    %c0_5 = arith.constant 0 : index
    %2 = vector.load %arg3[%c0_2, %c0_3, %c0_4, %c0_5] : memref<1x1x16x96xf32, #tpu.memory_space<vmem>>, vector<1x1x16x96xf32>
    %3 = vector.shape_cast %2 : vector<1x1x16x96xf32> to vector<16x96xf32>
    %4 = vector.extract_strided_slice %3 {offsets = [0, 0], sizes = [16, 48], strides = [1, 1]} : vector<16x96xf32> to vector<16x48xf32>
    %5 = vector.extract_strided_slice %3 {offsets = [0, 48], sizes = [16, 48], strides = [1, 1]} : vector<16x96xf32> to vector<16x48xf32>
    %cst = arith.constant 0xFF800000 : f32
    %6 = vector.broadcast %cst : f32 to vector<16x32xf32>
    %7 = tpu.concatenate %4, %1, %5, %6 in 1 : vector<16x48xf32>, vector<16x128xf32>, vector<16x48xf32>, vector<16x32xf32> -> vector<16x256xf32>
    %8 = tpu.iota {dimensions = array<i32: 1>} : vector<1x256xi32>
    %c16_i32 = arith.constant 16 : i32
    %c0_i32 = arith.constant 0 : i32
    %9 = arith.cmpi eq, %c16_i32, %c0_i32 : i32
    %c1_i32 = arith.constant 1 : i32
    %10 = arith.select %9, %c1_i32, %c16_i32 : i32
    %11 = vector.broadcast %10 : i32 to vector<1x256xi32>
    %12 = arith.remsi %8, %11 : vector<1x256xi32>
    %c0_i32_6 = arith.constant 0 : i32
    %13 = vector.broadcast %c0_i32_6 : i32 to vector<1x256xi32>
    %14 = arith.cmpi ne, %12, %13 : vector<1x256xi32>
    %c0_i32_7 = arith.constant 0 : i32
    %15 = vector.broadcast %c0_i32_7 : i32 to vector<1x256xi32>
    %16 = arith.cmpi slt, %12, %15 : vector<1x256xi32>
    %c0_i32_8 = arith.constant 0 : i32
    %17 = arith.cmpi slt, %10, %c0_i32_8 : i32
    %18 = vector.broadcast %17 : i1 to vector<1x256xi1>
    %19 = vector.broadcast %18 : vector<1x256xi1> to vector<1x256xi1>
    %20 = arith.xori %16, %19 : vector<1x256xi1>
    %21 = arith.andi %20, %14 : vector<1x256xi1>
    %22 = vector.broadcast %10 : i32 to vector<1x256xi32>
    %23 = arith.addi %12, %22 : vector<1x256xi32>
    %24 = arith.select %21, %23, %12 : vector<1x256xi1>, vector<1x256xi32>
    %c15_i32 = arith.constant 15 : i32
    %25 = vector.broadcast %c15_i32 : i32 to vector<1x256xi32>
    %26 = arith.cmpi slt, %24, %25 : vector<1x256xi32>
    %c0_i32_9 = arith.constant 0 : i32
    %27 = vector.broadcast %c0_i32_9 : i32 to vector<1x256xi32>
    %28 = arith.cmpi sgt, %24, %27 : vector<1x256xi32>
    %c240_i32 = arith.constant 240 : i32
    %29 = tpu.dynamic_rotate %7 by %c240_i32 dim 1 : vector<16x256xf32>, i32 -> vector<16x256xf32>
    %c16_i32_10 = arith.constant 16 : i32
    %30 = tpu.dynamic_rotate %7 by %c16_i32_10 dim 1 : vector<16x256xf32>, i32 -> vector<16x256xf32>
    %31 = arith.maximumf %29, %30 : vector<16x256xf32>
    %32 = arith.maximumf %7, %31 : vector<16x256xf32>
    %33 = vector.extract_strided_slice %32 {offsets = [0, 1], sizes = [16, 255], strides = [1, 1]} : vector<16x256xf32> to vector<16x255xf32>
    %34 = vector.extract_strided_slice %32 {offsets = [0, 0], sizes = [16, 1], strides = [1, 1]} : vector<16x256xf32> to vector<16x1xf32>
    %35 = tpu.concatenate %33, %34 in 1 : vector<16x255xf32>, vector<16x1xf32> -> vector<16x256xf32>
    %cst_11 = arith.constant 0xFF800000 : f32
    %36 = vector.shape_cast %26 : vector<1x256xi1> to vector<1x256xi1>
    %37 = vector.broadcast %36 : vector<1x256xi1> to vector<16x256xi1>
    %38 = vector.broadcast %cst_11 : f32 to vector<16x256xf32>
    %39 = arith.select %37, %35, %38 : vector<16x256xi1>, vector<16x256xf32>
    %40 = vector.extract_strided_slice %32 {offsets = [0, 255], sizes = [16, 1], strides = [1, 1]} : vector<16x256xf32> to vector<16x1xf32>
    %41 = vector.extract_strided_slice %32 {offsets = [0, 0], sizes = [16, 255], strides = [1, 1]} : vector<16x256xf32> to vector<16x255xf32>
    %42 = tpu.concatenate %40, %41 in 1 : vector<16x1xf32>, vector<16x255xf32> -> vector<16x256xf32>
    %cst_12 = arith.constant 0xFF800000 : f32
    %43 = vector.shape_cast %28 : vector<1x256xi1> to vector<1x256xi1>
    %44 = vector.broadcast %43 : vector<1x256xi1> to vector<16x256xi1>
    %45 = vector.broadcast %cst_12 : f32 to vector<16x256xf32>
    %46 = arith.select %44, %42, %45 : vector<16x256xi1>, vector<16x256xf32>
    %47 = arith.maximumf %39, %46 : vector<16x256xf32>
    %48 = arith.maximumf %32, %47 : vector<16x256xf32>
    %49 = vector.extract_strided_slice %48 {offsets = [0, 48], sizes = [16, 128], strides = [1, 1]} : vector<16x256xf32> to vector<16x128xf32>
    %c240_i32_13 = arith.constant 240 : i32
    %50 = tpu.dynamic_rotate %48 by %c240_i32_13 dim 1 : vector<16x256xf32>, i32 -> vector<16x256xf32>
    %c16_i32_14 = arith.constant 16 : i32
    %51 = tpu.dynamic_rotate %48 by %c16_i32_14 dim 1 : vector<16x256xf32>, i32 -> vector<16x256xf32>
    %52 = arith.maximumf %50, %51 : vector<16x256xf32>
    %53 = arith.maximumf %48, %52 : vector<16x256xf32>
    %54 = vector.extract_strided_slice %53 {offsets = [0, 1], sizes = [16, 255], strides = [1, 1]} : vector<16x256xf32> to vector<16x255xf32>
    %55 = vector.extract_strided_slice %53 {offsets = [0, 0], sizes = [16, 1], strides = [1, 1]} : vector<16x256xf32> to vector<16x1xf32>
    %56 = tpu.concatenate %54, %55 in 1 : vector<16x255xf32>, vector<16x1xf32> -> vector<16x256xf32>
    %cst_15 = arith.constant 0xFF800000 : f32
    %57 = vector.shape_cast %26 : vector<1x256xi1> to vector<1x256xi1>
    %58 = vector.broadcast %57 : vector<1x256xi1> to vector<16x256xi1>
    %59 = vector.broadcast %cst_15 : f32 to vector<16x256xf32>
    %60 = arith.select %58, %56, %59 : vector<16x256xi1>, vector<16x256xf32>
    %61 = vector.extract_strided_slice %53 {offsets = [0, 255], sizes = [16, 1], strides = [1, 1]} : vector<16x256xf32> to vector<16x1xf32>
    %62 = vector.extract_strided_slice %53 {offsets = [0, 0], sizes = [16, 255], strides = [1, 1]} : vector<16x256xf32> to vector<16x255xf32>
    %63 = tpu.concatenate %61, %62 in 1 : vector<16x1xf32>, vector<16x255xf32> -> vector<16x256xf32>
    %cst_16 = arith.constant 0xFF800000 : f32
    %64 = vector.shape_cast %28 : vector<1x256xi1> to vector<1x256xi1>
    %65 = vector.broadcast %64 : vector<1x256xi1> to vector<16x256xi1>
    %66 = vector.broadcast %cst_16 : f32 to vector<16x256xf32>
    %67 = arith.select %65, %63, %66 : vector<16x256xi1>, vector<16x256xf32>
    %68 = arith.maximumf %60, %67 : vector<16x256xf32>
    %69 = arith.maximumf %53, %68 : vector<16x256xf32>
    %70 = vector.extract_strided_slice %69 {offsets = [0, 48], sizes = [16, 128], strides = [1, 1]} : vector<16x256xf32> to vector<16x128xf32>
    %c240_i32_17 = arith.constant 240 : i32
    %71 = tpu.dynamic_rotate %69 by %c240_i32_17 dim 1 : vector<16x256xf32>, i32 -> vector<16x256xf32>
    %c16_i32_18 = arith.constant 16 : i32
    %72 = tpu.dynamic_rotate %69 by %c16_i32_18 dim 1 : vector<16x256xf32>, i32 -> vector<16x256xf32>
    %73 = arith.maximumf %71, %72 : vector<16x256xf32>
    %74 = arith.maximumf %69, %73 : vector<16x256xf32>
    %75 = vector.extract_strided_slice %74 {offsets = [0, 1], sizes = [16, 255], strides = [1, 1]} : vector<16x256xf32> to vector<16x255xf32>
    %76 = vector.extract_strided_slice %74 {offsets = [0, 0], sizes = [16, 1], strides = [1, 1]} : vector<16x256xf32> to vector<16x1xf32>
    %77 = tpu.concatenate %75, %76 in 1 : vector<16x255xf32>, vector<16x1xf32> -> vector<16x256xf32>
    %cst_19 = arith.constant 0xFF800000 : f32
    %78 = vector.shape_cast %26 : vector<1x256xi1> to vector<1x256xi1>
    %79 = vector.broadcast %78 : vector<1x256xi1> to vector<16x256xi1>
    %80 = vector.broadcast %cst_19 : f32 to vector<16x256xf32>
    %81 = arith.select %79, %77, %80 : vector<16x256xi1>, vector<16x256xf32>
    %82 = vector.extract_strided_slice %74 {offsets = [0, 255], sizes = [16, 1], strides = [1, 1]} : vector<16x256xf32> to vector<16x1xf32>
    %83 = vector.extract_strided_slice %74 {offsets = [0, 0], sizes = [16, 255], strides = [1, 1]} : vector<16x256xf32> to vector<16x255xf32>
    %84 = tpu.concatenate %82, %83 in 1 : vector<16x1xf32>, vector<16x255xf32> -> vector<16x256xf32>
    %cst_20 = arith.constant 0xFF800000 : f32
    %85 = vector.shape_cast %28 : vector<1x256xi1> to vector<1x256xi1>
    %86 = vector.broadcast %85 : vector<1x256xi1> to vector<16x256xi1>
    %87 = vector.broadcast %cst_20 : f32 to vector<16x256xf32>
    %88 = arith.select %86, %84, %87 : vector<16x256xi1>, vector<16x256xf32>
    %89 = arith.maximumf %81, %88 : vector<16x256xf32>
    %90 = arith.maximumf %74, %89 : vector<16x256xf32>
    %91 = vector.extract_strided_slice %90 {offsets = [0, 48], sizes = [16, 128], strides = [1, 1]} : vector<16x256xf32> to vector<16x128xf32>
    %92 = tpu.concatenate %1, %49, %70, %91 in 0 : vector<16x128xf32>, vector<16x128xf32>, vector<16x128xf32>, vector<16x128xf32> -> vector<64x128xf32>
    %c0_21 = arith.constant 0 : index
    %c0_22 = arith.constant 0 : index
    %93 = vector.load %arg4[%c0_21, %c0_22] : memref<16x64xf32, #tpu.memory_space<vmem>>, vector<16x64xf32>
    %cst_23 = arith.constant dense<0.000000e+00> : vector<16x128xf32>
    %94 = tpu.matmul %93, %92, %cst_23 {dimension_numbers = #tpu.dot_dimension_numbers<[1], [0], [0], [1], [0, 0, 1, 1], [], []>} : vector<16x64xf32>, vector<64x128xf32>, vector<16x128xf32> -> vector<16x128xf32>
    %c0_24 = arith.constant 0 : index
    %c0_25 = arith.constant 0 : index
    %95 = vector.load %arg5[%c0_24, %c0_25] : memref<16x1xf32, #tpu.memory_space<vmem>>, vector<16x1xf32>
    %96 = vector.broadcast %95 : vector<16x1xf32> to vector<16x128xf32>
    %97 = arith.addf %94, %96 : vector<16x128xf32>
    %98 = arith.negf %97 : vector<16x128xf32>
    %99 = math.exp %98 : vector<16x128xf32>
    %cst_26 = arith.constant 1.000000e+00 : f32
    %100 = vector.broadcast %cst_26 : f32 to vector<16x128xf32>
    %101 = arith.addf %100, %99 : vector<16x128xf32>
    %102 = arith.divf %100, %101 : vector<16x128xf32>
    %103 = arith.mulf %97, %102 : vector<16x128xf32>
    %c0_27 = arith.constant 0 : index
    %c0_28 = arith.constant 0 : index
    %c0_29 = arith.constant 0 : index
    %104 = vector.load %arg6[%c0_27, %c0_28, %c0_29] : memref<1x16x128xf32, #tpu.memory_space<vmem>>, vector<1x16x128xf32>
    %105 = vector.shape_cast %104 : vector<1x16x128xf32> to vector<16x128xf32>
    %106 = vector.shape_cast %103 : vector<16x128xf32> to vector<1x16x128xf32>
    tpu.vector_store %arg6[%c0_27, %c0_28, %c0_29], %106 {strides = array<i32>} : memref<1x16x128xf32, #tpu.memory_space<vmem>>, vector<1x16x128xf32>,
    return
  }
  func.func @transform_0(%arg0: i32, %arg1: i32) -> (i32, i32, i32) {
    %c0_i32 = arith.constant 0 : i32
    %c0_i32_0 = arith.constant 0 : i32
    return %arg0, %c0_i32, %arg1 : i32, i32, i32
  }
  func.func @transform_1(%arg0: i32, %arg1: i32) -> (i32, i32, i32, i32) {
    %c0_i32 = arith.constant 0 : i32
    %c0_i32_0 = arith.constant 0 : i32
    %c0_i32_1 = arith.constant 0 : i32
    return %arg0, %arg1, %c0_i32, %c0_i32_0 : i32, i32, i32, i32
  }
  func.func @transform_2(%arg0: i32, %arg1: i32) -> (i32, i32) {
    %c0_i32 = arith.constant 0 : i32
    %c0_i32_0 = arith.constant 0 : i32
    %c0_i32_1 = arith.constant 0 : i32
    return %c0_i32, %c0_i32_0 : i32, i32
  }
  func.func @transform_3(%arg0: i32, %arg1: i32) -> (i32, i32) {
    %c0_i32 = arith.constant 0 : i32
    %c0_i32_0 = arith.constant 0 : i32
    %c0_i32_1 = arith.constant 0 : i32
    return %c0_i32, %c0_i32_0 : i32, i32
  }
  func.func @transform_4(%arg0: i32, %arg1: i32) -> (i32, i32, i32) {
    %c0_i32 = arith.constant 0 : i32
    %c0_i32_0 = arith.constant 0 : i32
    return %arg0, %c0_i32, %arg1 : i32, i32, i32
  }
}

module attributes {stable_mosaic.version = 11 : i64} {
  func.func @_spp_kernel(%arg0: i32, %arg1: i32, %arg2: memref<1x16x128xf32, #tpu.memory_space<vmem>>, %arg3: memref<1x1x16x96xf32, #tpu.memory_space<vmem>>, %arg4: memref<16x64xf32, #tpu.memory_space<vmem>>, %arg5: memref<16x1xf32, #tpu.memory_space<vmem>>, %arg6: memref<1x16x128xf32, #tpu.memory_space<vmem>>) attributes {dimension_semantics = [#tpu.dimension_semantics<parallel>, #tpu.dimension_semantics<parallel>], iteration_bounds = array<i64: 2, 2>, scalar_prefetch = 0 : i64, scratch_operands = 0 : i64, tpu.core_type = #tpu.core_type<tc>, window_params = [{transform_indices = @transform_0, window_bounds = array<i64: 1, 16, 128>}, {transform_indices = @transform_1, window_bounds = array<i64: 1, 1, 16, 96>}, {pipeline_mode = #tpu.pipeline_mode<synchronous>, transform_indices = @transform_2, window_bounds = array<i64: 16, 64>}, {pipeline_mode = #tpu.pipeline_mode<synchronous>, transform_indices = @transform_3, window_bounds = array<i64: 16, 1>}, {transform_indices = @transform_4, window_bounds = array<i64: 1, 16, 128>}]} {
    %c0 = arith.constant 0 : index
    %c0_0 = arith.constant 0 : index
    %c0_1 = arith.constant 0 : index
    %0 = vector.load %arg2[%c0, %c0_0, %c0_1] : memref<1x16x128xf32, #tpu.memory_space<vmem>>, vector<1x16x128xf32>
    %1 = vector.shape_cast %0 : vector<1x16x128xf32> to vector<16x128xf32>
    %c0_2 = arith.constant 0 : index
    %c0_3 = arith.constant 0 : index
    %c0_4 = arith.constant 0 : index
    %c0_5 = arith.constant 0 : index
    %2 = vector.load %arg3[%c0_2, %c0_3, %c0_4, %c0_5] : memref<1x1x16x96xf32, #tpu.memory_space<vmem>>, vector<1x1x16x96xf32>
    %3 = vector.shape_cast %2 : vector<1x1x16x96xf32> to vector<16x96xf32>
    %4 = vector.extract_strided_slice %3 {offsets = [0, 0], sizes = [16, 48], strides = [1, 1]} : vector<16x96xf32> to vector<16x48xf32>
    %5 = vector.extract_strided_slice %3 {offsets = [0, 48], sizes = [16, 48], strides = [1, 1]} : vector<16x96xf32> to vector<16x48xf32>
    %cst = arith.constant 0xFF800000 : f32
    %6 = vector.broadcast %cst : f32 to vector<16x32xf32>
    %7 = tpu.concatenate %4, %1, %5, %6 in 1 : vector<16x48xf32>, vector<16x128xf32>, vector<16x48xf32>, vector<16x32xf32> -> vector<16x256xf32>
    %8 = tpu.iota {dimensions = array<i32: 1>} : vector<1x256xi32>
    %c16_i32 = arith.constant 16 : i32
    %c0_i32 = arith.constant 0 : i32
    %9 = arith.cmpi eq, %c16_i32, %c0_i32 : i32
    %c1_i32 = arith.constant 1 : i32
    %10 = arith.select %9, %c1_i32, %c16_i32 : i32
    %11 = vector.broadcast %10 : i32 to vector<1x256xi32>
    %12 = arith.remsi %8, %11 : vector<1x256xi32>
    %c0_i32_6 = arith.constant 0 : i32
    %13 = vector.broadcast %c0_i32_6 : i32 to vector<1x256xi32>
    %14 = arith.cmpi ne, %12, %13 : vector<1x256xi32>
    %c0_i32_7 = arith.constant 0 : i32
    %15 = vector.broadcast %c0_i32_7 : i32 to vector<1x256xi32>
    %16 = arith.cmpi slt, %12, %15 : vector<1x256xi32>
    %c0_i32_8 = arith.constant 0 : i32
    %17 = arith.cmpi slt, %10, %c0_i32_8 : i32
    %18 = vector.broadcast %17 : i1 to vector<1x256xi1>
    %19 = vector.broadcast %18 : vector<1x256xi1> to vector<1x256xi1>
    %20 = arith.xori %16, %19 : vector<1x256xi1>
    %21 = arith.andi %20, %14 : vector<1x256xi1>
    %22 = vector.broadcast %10 : i32 to vector<1x256xi32>
    %23 = arith.addi %12, %22 : vector<1x256xi32>
    %24 = arith.select %21, %23, %12 : vector<1x256xi1>, vector<1x256xi32>
    %c15_i32 = arith.constant 15 : i32
    %25 = vector.broadcast %c15_i32 : i32 to vector<1x256xi32>
    %26 = arith.cmpi slt, %24, %25 : vector<1x256xi32>
    %c0_i32_9 = arith.constant 0 : i32
    %27 = vector.broadcast %c0_i32_9 : i32 to vector<1x256xi32>
    %28 = arith.cmpi sgt, %24, %27 : vector<1x256xi32>
    %cst_10 = arith.constant 0xFF800000 : f32
    %29 = vector.broadcast %cst_10 : f32 to vector<16x16xf32>
    %30 = vector.extract_strided_slice %7 {offsets = [0, 16], sizes = [16, 240], strides = [1, 1]} : vector<16x256xf32> to vector<16x240xf32>
    %31 = tpu.concatenate %30, %29 in 1 : vector<16x240xf32>, vector<16x16xf32> -> vector<16x256xf32>
    %32 = vector.extract_strided_slice %7 {offsets = [0, 0], sizes = [16, 240], strides = [1, 1]} : vector<16x256xf32> to vector<16x240xf32>
    %33 = tpu.concatenate %29, %32 in 1 : vector<16x16xf32>, vector<16x240xf32> -> vector<16x256xf32>
    %34 = arith.maximumf %31, %33 : vector<16x256xf32>
    %35 = arith.maximumf %7, %34 : vector<16x256xf32>
    %36 = vector.extract_strided_slice %35 {offsets = [0, 1], sizes = [16, 255], strides = [1, 1]} : vector<16x256xf32> to vector<16x255xf32>
    %37 = vector.extract_strided_slice %35 {offsets = [0, 0], sizes = [16, 1], strides = [1, 1]} : vector<16x256xf32> to vector<16x1xf32>
    %38 = tpu.concatenate %36, %37 in 1 : vector<16x255xf32>, vector<16x1xf32> -> vector<16x256xf32>
    %cst_11 = arith.constant 0xFF800000 : f32
    %39 = vector.shape_cast %26 : vector<1x256xi1> to vector<1x256xi1>
    %40 = vector.broadcast %39 : vector<1x256xi1> to vector<16x256xi1>
    %41 = vector.broadcast %cst_11 : f32 to vector<16x256xf32>
    %42 = arith.select %40, %38, %41 : vector<16x256xi1>, vector<16x256xf32>
    %43 = vector.extract_strided_slice %35 {offsets = [0, 255], sizes = [16, 1], strides = [1, 1]} : vector<16x256xf32> to vector<16x1xf32>
    %44 = vector.extract_strided_slice %35 {offsets = [0, 0], sizes = [16, 255], strides = [1, 1]} : vector<16x256xf32> to vector<16x255xf32>
    %45 = tpu.concatenate %43, %44 in 1 : vector<16x1xf32>, vector<16x255xf32> -> vector<16x256xf32>
    %cst_12 = arith.constant 0xFF800000 : f32
    %46 = vector.shape_cast %28 : vector<1x256xi1> to vector<1x256xi1>
    %47 = vector.broadcast %46 : vector<1x256xi1> to vector<16x256xi1>
    %48 = vector.broadcast %cst_12 : f32 to vector<16x256xf32>
    %49 = arith.select %47, %45, %48 : vector<16x256xi1>, vector<16x256xf32>
    %50 = arith.maximumf %42, %49 : vector<16x256xf32>
    %51 = arith.maximumf %35, %50 : vector<16x256xf32>
    %52 = vector.extract_strided_slice %51 {offsets = [0, 48], sizes = [16, 128], strides = [1, 1]} : vector<16x256xf32> to vector<16x128xf32>
    %53 = vector.extract_strided_slice %51 {offsets = [0, 16], sizes = [16, 240], strides = [1, 1]} : vector<16x256xf32> to vector<16x240xf32>
    %54 = tpu.concatenate %53, %29 in 1 : vector<16x240xf32>, vector<16x16xf32> -> vector<16x256xf32>
    %55 = vector.extract_strided_slice %51 {offsets = [0, 0], sizes = [16, 240], strides = [1, 1]} : vector<16x256xf32> to vector<16x240xf32>
    %56 = tpu.concatenate %29, %55 in 1 : vector<16x16xf32>, vector<16x240xf32> -> vector<16x256xf32>
    %57 = arith.maximumf %54, %56 : vector<16x256xf32>
    %58 = arith.maximumf %51, %57 : vector<16x256xf32>
    %59 = vector.extract_strided_slice %58 {offsets = [0, 1], sizes = [16, 255], strides = [1, 1]} : vector<16x256xf32> to vector<16x255xf32>
    %60 = vector.extract_strided_slice %58 {offsets = [0, 0], sizes = [16, 1], strides = [1, 1]} : vector<16x256xf32> to vector<16x1xf32>
    %61 = tpu.concatenate %59, %60 in 1 : vector<16x255xf32>, vector<16x1xf32> -> vector<16x256xf32>
    %cst_13 = arith.constant 0xFF800000 : f32
    %62 = vector.shape_cast %26 : vector<1x256xi1> to vector<1x256xi1>
    %63 = vector.broadcast %62 : vector<1x256xi1> to vector<16x256xi1>
    %64 = vector.broadcast %cst_13 : f32 to vector<16x256xf32>
    %65 = arith.select %63, %61, %64 : vector<16x256xi1>, vector<16x256xf32>
    %66 = vector.extract_strided_slice %58 {offsets = [0, 255], sizes = [16, 1], strides = [1, 1]} : vector<16x256xf32> to vector<16x1xf32>
    %67 = vector.extract_strided_slice %58 {offsets = [0, 0], sizes = [16, 255], strides = [1, 1]} : vector<16x256xf32> to vector<16x255xf32>
    %68 = tpu.concatenate %66, %67 in 1 : vector<16x1xf32>, vector<16x255xf32> -> vector<16x256xf32>
    %cst_14 = arith.constant 0xFF800000 : f32
    %69 = vector.shape_cast %28 : vector<1x256xi1> to vector<1x256xi1>
    %70 = vector.broadcast %69 : vector<1x256xi1> to vector<16x256xi1>
    %71 = vector.broadcast %cst_14 : f32 to vector<16x256xf32>
    %72 = arith.select %70, %68, %71 : vector<16x256xi1>, vector<16x256xf32>
    %73 = arith.maximumf %65, %72 : vector<16x256xf32>
    %74 = arith.maximumf %58, %73 : vector<16x256xf32>
    %75 = vector.extract_strided_slice %74 {offsets = [0, 48], sizes = [16, 128], strides = [1, 1]} : vector<16x256xf32> to vector<16x128xf32>
    %76 = vector.extract_strided_slice %74 {offsets = [0, 16], sizes = [16, 240], strides = [1, 1]} : vector<16x256xf32> to vector<16x240xf32>
    %77 = tpu.concatenate %76, %29 in 1 : vector<16x240xf32>, vector<16x16xf32> -> vector<16x256xf32>
    %78 = vector.extract_strided_slice %74 {offsets = [0, 0], sizes = [16, 240], strides = [1, 1]} : vector<16x256xf32> to vector<16x240xf32>
    %79 = tpu.concatenate %29, %78 in 1 : vector<16x16xf32>, vector<16x240xf32> -> vector<16x256xf32>
    %80 = arith.maximumf %77, %79 : vector<16x256xf32>
    %81 = arith.maximumf %74, %80 : vector<16x256xf32>
    %82 = vector.extract_strided_slice %81 {offsets = [0, 1], sizes = [16, 255], strides = [1, 1]} : vector<16x256xf32> to vector<16x255xf32>
    %83 = vector.extract_strided_slice %81 {offsets = [0, 0], sizes = [16, 1], strides = [1, 1]} : vector<16x256xf32> to vector<16x1xf32>
    %84 = tpu.concatenate %82, %83 in 1 : vector<16x255xf32>, vector<16x1xf32> -> vector<16x256xf32>
    %cst_15 = arith.constant 0xFF800000 : f32
    %85 = vector.shape_cast %26 : vector<1x256xi1> to vector<1x256xi1>
    %86 = vector.broadcast %85 : vector<1x256xi1> to vector<16x256xi1>
    %87 = vector.broadcast %cst_15 : f32 to vector<16x256xf32>
    %88 = arith.select %86, %84, %87 : vector<16x256xi1>, vector<16x256xf32>
    %89 = vector.extract_strided_slice %81 {offsets = [0, 255], sizes = [16, 1], strides = [1, 1]} : vector<16x256xf32> to vector<16x1xf32>
    %90 = vector.extract_strided_slice %81 {offsets = [0, 0], sizes = [16, 255], strides = [1, 1]} : vector<16x256xf32> to vector<16x255xf32>
    %91 = tpu.concatenate %89, %90 in 1 : vector<16x1xf32>, vector<16x255xf32> -> vector<16x256xf32>
    %cst_16 = arith.constant 0xFF800000 : f32
    %92 = vector.shape_cast %28 : vector<1x256xi1> to vector<1x256xi1>
    %93 = vector.broadcast %92 : vector<1x256xi1> to vector<16x256xi1>
    %94 = vector.broadcast %cst_16 : f32 to vector<16x256xf32>
    %95 = arith.select %93, %91, %94 : vector<16x256xi1>, vector<16x256xf32>
    %96 = arith.maximumf %88, %95 : vector<16x256xf32>
    %97 = arith.maximumf %81, %96 : vector<16x256xf32>
    %98 = vector.extract_strided_slice %97 {offsets = [0, 48], sizes = [16, 128], strides = [1, 1]} : vector<16x256xf32> to vector<16x128xf32>
    %cst_17 = arith.constant 0.000000e+00 : f32
    %99 = vector.broadcast %cst_17 : f32 to vector<16x128xf32>
    %c0_18 = arith.constant 0 : index
    %c0_19 = arith.constant 0 : index
    %100 = vector.load %arg4[%c0_18, %c0_19] : memref<16x64xf32, #tpu.memory_space<vmem>>, vector<16x16xf32>
    %cst_20 = arith.constant dense<0.000000e+00> : vector<16x128xf32>
    %101 = tpu.matmul %100, %1, %cst_20 {dimension_numbers = #tpu.dot_dimension_numbers<[1], [0], [0], [1], [0, 0, 1, 1], [], []>} : vector<16x16xf32>, vector<16x128xf32>, vector<16x128xf32> -> vector<16x128xf32>
    %102 = arith.addf %99, %101 : vector<16x128xf32>
    %c0_21 = arith.constant 0 : index
    %c16 = arith.constant 16 : index
    %103 = vector.load %arg4[%c0_21, %c16] : memref<16x64xf32, #tpu.memory_space<vmem>>, vector<16x16xf32>
    %cst_22 = arith.constant dense<0.000000e+00> : vector<16x128xf32>
    %104 = tpu.matmul %103, %52, %cst_22 {dimension_numbers = #tpu.dot_dimension_numbers<[1], [0], [0], [1], [0, 0, 1, 1], [], []>} : vector<16x16xf32>, vector<16x128xf32>, vector<16x128xf32> -> vector<16x128xf32>
    %105 = arith.addf %102, %104 : vector<16x128xf32>
    %c0_23 = arith.constant 0 : index
    %c32 = arith.constant 32 : index
    %106 = vector.load %arg4[%c0_23, %c32] : memref<16x64xf32, #tpu.memory_space<vmem>>, vector<16x16xf32>
    %cst_24 = arith.constant dense<0.000000e+00> : vector<16x128xf32>
    %107 = tpu.matmul %106, %75, %cst_24 {dimension_numbers = #tpu.dot_dimension_numbers<[1], [0], [0], [1], [0, 0, 1, 1], [], []>} : vector<16x16xf32>, vector<16x128xf32>, vector<16x128xf32> -> vector<16x128xf32>
    %108 = arith.addf %105, %107 : vector<16x128xf32>
    %c0_25 = arith.constant 0 : index
    %c48 = arith.constant 48 : index
    %109 = vector.load %arg4[%c0_25, %c48] : memref<16x64xf32, #tpu.memory_space<vmem>>, vector<16x16xf32>
    %cst_26 = arith.constant dense<0.000000e+00> : vector<16x128xf32>
    %110 = tpu.matmul %109, %98, %cst_26 {dimension_numbers = #tpu.dot_dimension_numbers<[1], [0], [0], [1], [0, 0, 1, 1], [], []>} : vector<16x16xf32>, vector<16x128xf32>, vector<16x128xf32> -> vector<16x128xf32>
    %111 = arith.addf %108, %110 : vector<16x128xf32>
    %c0_27 = arith.constant 0 : index
    %c0_28 = arith.constant 0 : index
    %112 = vector.load %arg5[%c0_27, %c0_28] : memref<16x1xf32, #tpu.memory_space<vmem>>, vector<16x1xf32>
    %113 = vector.broadcast %112 : vector<16x1xf32> to vector<16x128xf32>
    %114 = arith.addf %111, %113 : vector<16x128xf32>
    %115 = arith.negf %114 : vector<16x128xf32>
    %116 = math.exp %115 : vector<16x128xf32>
    %cst_29 = arith.constant 1.000000e+00 : f32
    %117 = vector.broadcast %cst_29 : f32 to vector<16x128xf32>
    %118 = arith.addf %117, %116 : vector<16x128xf32>
    %119 = arith.divf %117, %118 : vector<16x128xf32>
    %120 = arith.mulf %114, %119 : vector<16x128xf32>
    %c0_30 = arith.constant 0 : index
    %c0_31 = arith.constant 0 : index
    %c0_32 = arith.constant 0 : index
    %121 = vector.load %arg6[%c0_30, %c0_31, %c0_32] : memref<1x16x128xf32, #tpu.memory_space<vmem>>, vector<1x16x128xf32>
    %122 = vector.shape_cast %121 : vector<1x16x128xf32> to vector<16x128xf32>
    %123 = vector.shape_cast %120 : vector<16x128xf32> to vector<1x16x128xf32>
    tpu.vector_store %arg6[%c0_30, %c0_31, %c0_32], %123 {strides = array<i32>} : memref<1x16x128xf32, #tpu.memory_space<vmem>>, vector<1x16x128xf32>,
    return
  }
  func.func @transform_0(%arg0: i32, %arg1: i32) -> (i32, i32, i32) {
    %c0_i32 = arith.constant 0 : i32
    %c0_i32_0 = arith.constant 0 : i32
    return %arg0, %c0_i32, %arg1 : i32, i32, i32
  }
  func.func @transform_1(%arg0: i32, %arg1: i32) -> (i32, i32, i32, i32) {
    %c0_i32 = arith.constant 0 : i32
    %c0_i32_0 = arith.constant 0 : i32
    %c0_i32_1 = arith.constant 0 : i32
    return %arg0, %arg1, %c0_i32, %c0_i32_0 : i32, i32, i32, i32
  }
  func.func @transform_2(%arg0: i32, %arg1: i32) -> (i32, i32) {
    %c0_i32 = arith.constant 0 : i32
    %c0_i32_0 = arith.constant 0 : i32
    %c0_i32_1 = arith.constant 0 : i32
    return %c0_i32, %c0_i32_0 : i32, i32
  }
  func.func @transform_3(%arg0: i32, %arg1: i32) -> (i32, i32) {
    %c0_i32 = arith.constant 0 : i32
    %c0_i32_0 = arith.constant 0 : i32
    %c0_i32_1 = arith.constant 0 : i32
    return %c0_i32, %c0_i32_0 : i32, i32
  }
  func.func @transform_4(%arg0: i32, %arg1: i32) -> (i32, i32, i32) {
    %c0_i32 = arith.constant 0 : i32
    %c0_i32_0 = arith.constant 0 : i32
    return %arg0, %c0_i32, %arg1 : i32, i32, i32
  }
}

</mosaic_0001>

<llo_original>
// kernel: tpu_custom_call.1
$region0: #{tpu_custom_call.1}
  #allocation0 [shape = 'u32[]', space=smem, size = 0x4, offset = 0x4, fixed_abs, tag = 'smem constant byte address 0x4 - core index']
  #allocation1 [shape = 'u32[72,128]{1,0:T(1,128)}', space=vmem, size = 0x9000, scoped, tag = 'internal scratch']
  %s0 = inlined_call_operand.hbm [shape: f32[2,16,256], index: 0, kind: input, shape index: {}]
  %s1 = inlined_call_operand.hbm [shape: f32[2,2,16,96], index: 1, kind: input, shape index: {}]
  %s2 = inlined_call_operand.vmem [shape: f32[16,64], index: 2, kind: input, shape index: {}]
  %s3 = inlined_call_operand.vmem [shape: f32[16,1], index: 3, kind: input, shape index: {}]
  %s4 = inlined_call_operand.hbm [shape: f32[2,16,256], index: 4, kind: output, shape index: {}]
  %s5 = sld [smem:[#allocation0]]
  $region57: #{tpu_custom_call.1} parent=0
    _
  %s7 = ssub.s32 1, %s5
  %s8 = scalar_select 0, %s7, %s5
  $region1: #{tpu_custom_call.1} parent=0
    #allocation2 [shape = 'u8[16384]{0}', space=vmem, size = 0x4000, scoped, tag = 'input window, operand 0']
    #allocation3 [shape = 's32[2]{0}', space=sflag, size = 0x8, scoped, tag = 'scoped memory for tpu_custom_call.1']
    #allocation4 [shape = 's32[2]{0}', space=sflag, size = 0x8, scoped, tag = 'scoped memory for tpu_custom_call.1']
    #allocation5 [shape = 'u8[16384]{0}', space=vmem, size = 0x4000, scoped, tag = 'input window, operand 1']
    #allocation6 [shape = 's32[2]{0}', space=sflag, size = 0x8, scoped, tag = 'scoped memory for tpu_custom_call.1']
    #allocation7 [shape = 'u8[16384]{0}', space=vmem, size = 0x4000, scoped, tag = 'output window, operand 0']
    %9 = vsyncpa [#allocation3], 0
    %s10 = scalar_lea.sflag [#allocation3], 1
    %11 = vsyncpa %s10, 0
    %12 = vsyncpa [#allocation6], 0
    %s13 = scalar_lea.sflag [#allocation6], 1
    %14 = vsyncpa %s13, 0
    %15 = vsyncpa [#allocation4], 0
    %s16 = scalar_lea.sflag [#allocation4], 1
    %17 = vsyncpa %s16, 0
    loop: start=0, step=1, limit=6
    $region2: #{tpu_custom_call.1} parent=1 // loop_pre_header
      _
    $region3: #{tpu_custom_call.1} parent=1 // loop_header
      %s19 = sphi 0, %s23
      %p20 = scmp.ge.s32.totalorder %s19, 6
      %s26 = sphi 0, %s38
      %s27 = sphi 0, %s34
      %s28 = sphi 0, %s26
      %s29 = sphi 0, %s27
      %s30 = sphi 0, %s28
      %s31 = sphi 0, %s29
      %s43 = sphi 0, %s45
      %s46 = sphi 0, %s43
      %s47 = sphi 0, %s46
      %s63 = sphi 0, %s47
      %s71 = sphi 0, %s73
      %s74 = sphi 0, %s71
      %s75 = sphi 0, %s74
      %s91 = sphi 0, %s75
      %s95 = sphi 0, %s95
      %s97 = sphi 0, %s95
      %s98 = sphi 0, %s97
      %s112 = sphi 0, %s98
      %s116 = sphi 0, %s116
      %s118 = sphi 0, %s116
      %s119 = sphi 0, %s118
      %s133 = sphi 0, %s119
      %s141 = sphi 0, %s143
      %s144 = sphi 0, %s141
      %s145 = sphi 0, %s144
      %s161 = sphi 0, %s145
    $region4: #{tpu_custom_call.1} parent=1 // loop_header_branch
      %22 = sbr.rel (%p20) target = $region8
    $region5: #{tpu_custom_call.1} parent=1 // loop_body
      %s24 = ssub.s32 %s19, 1
      %s25 = ssub.s32 %s19, 2
      %s32 = sadd.s32 1, %s27
      %p33 = scmp.ge.s32.totalorder %s32, 2
      %s34 = scalar_select %p33, 0, %s32
      %s35 = sadd.s32 1, %s26
      %s36 = scalar_select %p33, %s35, %s26
      %p37 = scmp.ge.s32.totalorder %s36, 2
      %s38 = scalar_select %p37, 0, %s36
      %s39 = ssub.s32 %s26, %s38
      %s40 = ssub.s32 %s27, %s34
      %s41 = sor.u32 %s39, %s40
      %p42 = scmp.eq.s32.totalorder %s41, 0
      %s44 = sadd.s32 %s43, 1
      %s45 = scalar_select %p42, %s43, %s44
      %p48 = pneg %p42
      %p49 = scmp.eq.s32.totalorder %s19, 3
      %p50 = por %p48, %p49
      %p51 = scmp.ne.s32.totalorder %s43, %s46
      %p52 = scmp.eq.s32.totalorder %s19, 0
      %p53 = por %p51, %p52
      %p54 = scmp.ne.s32.totalorder %s43, %s46
      %p55 = scmp.eq.s32.totalorder %s24, 3
      %p56 = por %p54, %p55
      %p57 = scmp.ne.s32.totalorder %s46, %s47
      %p58 = scmp.eq.s32.totalorder %s24, 0
      %p59 = por %p57, %p58
      %p60 = scmp.ne.s32.totalorder %s46, %s47
      %p61 = scmp.eq.s32.totalorder %s25, 3
      %p62 = por %p60, %p61
      %p64 = scmp.ne.s32.totalorder %s47, %s63
      %p65 = scmp.eq.s32.totalorder %s25, 0
      %p66 = por %p64, %p65
      %s67 = ssub.s32 %s26, %s38
      %s68 = ssub.s32 %s27, %s34
      %s69 = sor.u32 %s67, %s68
      %p70 = scmp.eq.s32.totalorder %s69, 0
      %s72 = sadd.s32 %s71, 1
      %s73 = scalar_select %p70, %s71, %s72
      %p76 = pneg %p70
      %p77 = scmp.eq.s32.totalorder %s19, 3
      %p78 = por %p76, %p77
      %p79 = scmp.ne.s32.totalorder %s71, %s74
      %p80 = scmp.eq.s32.totalorder %s19, 0
      %p81 = por %p79, %p80
      %p82 = scmp.ne.s32.totalorder %s71, %s74
      %p83 = scmp.eq.s32.totalorder %s24, 3
      %p84 = por %p82, %p83
      %p85 = scmp.ne.s32.totalorder %s74, %s75
      %p86 = scmp.eq.s32.totalorder %s24, 0
      %p87 = por %p85, %p86
      %p88 = scmp.ne.s32.totalorder %s74, %s75
      %p89 = scmp.eq.s32.totalorder %s25, 3
      %p90 = por %p88, %p89
      %p92 = scmp.ne.s32.totalorder %s75, %s91
      %p93 = scmp.eq.s32.totalorder %s25, 0
      %p94 = por %p92, %p93
      %s96 = sadd.s32 %s95, 1
      %p99 = scmp.eq.s32.totalorder %s19, 3
      %p100 = scmp.ne.s32.totalorder %s95, %s97
      %p101 = scmp.eq.s32.totalorder %s19, 0
      %p102 = por %p100, %p101
      %p103 = scmp.ne.s32.totalorder %s95, %s97
      %p104 = scmp.eq.s32.totalorder %s24, 3
      %p105 = por %p103, %p104
      %p106 = scmp.ne.s32.totalorder %s97, %s98
      %p107 = scmp.eq.s32.totalorder %s24, 0
      %p108 = por %p106, %p107
      %p109 = scmp.ne.s32.totalorder %s97, %s98
      %p110 = scmp.eq.s32.totalorder %s25, 3
      %p111 = por %p109, %p110
      %p113 = scmp.ne.s32.totalorder %s98, %s112
      %p114 = scmp.eq.s32.totalorder %s25, 0
      %p115 = por %p113, %p114
      %s117 = sadd.s32 %s116, 1
      %p120 = scmp.eq.s32.totalorder %s19, 3
      %p121 = scmp.ne.s32.totalorder %s116, %s118
      %p122 = scmp.eq.s32.totalorder %s19, 0
      %p123 = por %p121, %p122
      %p124 = scmp.ne.s32.totalorder %s116, %s118
      %p125 = scmp.eq.s32.totalorder %s24, 3
      %p126 = por %p124, %p125
      %p127 = scmp.ne.s32.totalorder %s118, %s119
      %p128 = scmp.eq.s32.totalorder %s24, 0
      %p129 = por %p127, %p128
      %p130 = scmp.ne.s32.totalorder %s118, %s119
      %p131 = scmp.eq.s32.totalorder %s25, 3
      %p132 = por %p130, %p131
      %p134 = scmp.ne.s32.totalorder %s119, %s133
      %p135 = scmp.eq.s32.totalorder %s25, 0
      %p136 = por %p134, %p135
      %s137 = ssub.s32 %s26, %s38
      %s138 = ssub.s32 %s27, %s34
      %s139 = sor.u32 %s137, %s138
      %p140 = scmp.eq.s32.totalorder %s139, 0
      %s142 = sadd.s32 %s141, 1
      %s143 = scalar_select %p140, %s141, %s142
      %p146 = pneg %p140
      %p147 = scmp.eq.s32.totalorder %s19, 3
      %p148 = por %p146, %p147
      %p149 = scmp.ne.s32.totalorder %s141, %s144
      %p150 = scmp.eq.s32.totalorder %s19, 0
      %p151 = por %p149, %p150
      %p152 = scmp.ne.s32.totalorder %s141, %s144
      %p153 = scmp.eq.s32.totalorder %s24, 3
      %p154 = por %p152, %p153
      %p155 = scmp.ne.s32.totalorder %s144, %s145
      %p156 = scmp.eq.s32.totalorder %s24, 0
      %p157 = por %p155, %p156
      %p158 = scmp.ne.s32.totalorder %s144, %s145
      %p159 = scmp.eq.s32.totalorder %s25, 3
      %p160 = por %p158, %p159
      %p162 = scmp.ne.s32.totalorder %s145, %s161
      %p163 = scmp.eq.s32.totalorder %s25, 0
      %p164 = por %p162, %p163
      %p165 = scmp.le.s32.totalorder 1, %s19
      %p166 = scmp.lt.s32.totalorder %s19, 5
      %p167 = pnand %p165, %p166
      %p168 = pneg %p167
      // Predicated region
      $region9: #{tpu_custom_call.1} parent=5 // pred_check
        _
      $region10: #{tpu_custom_call.1} parent=5 // pred_check_branch
        %170 = sbr.rel (%p167) target = $region12
      $region11: #{tpu_custom_call.1} parent=5 // pred_region
        %s171 = ssub.s32 %s19, 1
        // Predicated region
        $region13: #{tpu_custom_call.1} parent=11 // pred_check
          %p172 = pneg %p108
        $region14: #{tpu_custom_call.1} parent=11 // pred_check_branch
          %174 = sbr.rel (%p172) target = $region16
        $region15: #{tpu_custom_call.1} parent=11 // pred_region
          _
        $region16: #{tpu_custom_call.1} parent=11 // pred_fallthru
          _
        // Predicated region
        $region17: #{tpu_custom_call.1} parent=11 // pred_check
          %p175 = pneg %p129
        $region18: #{tpu_custom_call.1} parent=11 // pred_check_branch
          %177 = sbr.rel (%p175) target = $region20
        $region19: #{tpu_custom_call.1} parent=11 // pred_region
          _
        $region20: #{tpu_custom_call.1} parent=11 // pred_fallthru
          _
      $region12: #{tpu_custom_call.1} parent=5 // pred_fallthru
        _
      %p178 = scmp.lt.s32.totalorder %s19, 4
      // Predicated region
      $region21: #{tpu_custom_call.1} parent=5 // pred_check
        %p179 = pneg %p178
      $region22: #{tpu_custom_call.1} parent=5 // pred_check_branch
        %181 = sbr.rel (%p179) target = $region24
      $region23: #{tpu_custom_call.1} parent=5 // pred_region
        // Predicated region
        $region25: #{tpu_custom_call.1} parent=23 // pred_check
          %p182 = pneg %p53
        $region26: #{tpu_custom_call.1} parent=23 // pred_check_branch
          %184 = sbr.rel (%p182) target = $region28
        $region27: #{tpu_custom_call.1} parent=23 // pred_region
          %s185 = sand.u32 %s43, 1
          %s186 = scalar_lea.sflag [#allocation3], %s185
          %s187 = sand.u32 %s43, 1
          %s188 = smul.addr %s187, 16
          %s189 = scalar_lea.vmem [#allocation2], %s188
          %191 = vsyncadd %s186, 0
          %s192 = smul.addr %s26, 4
          %s193 = sadd.s32 %s27, %s192
          %s194 = smul.addr %s193, 8
          %s195 = scalar_lea.hbm %s0, %s194
          %s196 = sshll.u32 %s195, 4
          %s197 = int_to_ptr.hbm [resolvable:$true] %s196
          %s198 = sshll.u32 %s189, 4
          %s199 = int_to_ptr.vmem [resolvable:$true] %s198
          %204 = dma.hbm_to_vmem [thread:$0]  %s197, 256, %s199, %s186, 256, 128, 8
        $region28: #{tpu_custom_call.1} parent=23 // pred_fallthru
          _
        // Predicated region
        $region29: #{tpu_custom_call.1} parent=23 // pred_check
          %p205 = pneg %p81
        $region30: #{tpu_custom_call.1} parent=23 // pred_check_branch
          %207 = sbr.rel (%p205) target = $region32
        $region31: #{tpu_custom_call.1} parent=23 // pred_region
          %s208 = sand.u32 %s71, 1
          %s209 = scalar_lea.sflag [#allocation6], %s208
          %s210 = sand.u32 %s71, 1
          %s211 = smul.addr %s210, 16
          %s212 = scalar_lea.vmem [#allocation5], %s211
          %214 = vsyncadd %s209, 0
          %s215 = smul.addr %s27, 2
          %s216 = smul.addr %s26, 4
          %s217 = sadd.s32 %s215, %s216
          %s218 = smul.addr %s217, 8
          %s219 = scalar_lea.hbm %s1, %s218
          %s220 = sshll.u32 %s219, 4
          %s221 = int_to_ptr.hbm [resolvable:$true] %s220
          %s222 = sshll.u32 %s212, 4
          %s223 = int_to_ptr.vmem [resolvable:$true] %s222
          %228 = dma.hbm_to_vmem [thread:$0]  %s221, 256, %s223, %s209, 128, 128, 8
        $region32: #{tpu_custom_call.1} parent=23 // pred_fallthru
          _
      $region24: #{tpu_custom_call.1} parent=5 // pred_fallthru
        _
      %p229 = scmp.le.s32.totalorder 1, %s19
      %p230 = scmp.lt.s32.totalorder %s19, 5
      %p231 = pnand %p229, %p230
      %p232 = pneg %p231
      // Predicated region
      $region33: #{tpu_custom_call.1} parent=5 // pred_check
        _
      $region34: #{tpu_custom_call.1} parent=5 // pred_check_branch
        %234 = sbr.rel (%p231) target = $region36
      $region35: #{tpu_custom_call.1} parent=5 // pred_region
        %s235 = ssub.s32 %s19, 1
        %s236 = sand.u32 %s46, 1
        %s237 = scalar_lea.sflag [#allocation3], %s236
        %s238 = sand.u32 %s46, 1
        %s239 = smul.addr %s238, 16
        %s240 = scalar_lea.vmem [#allocation2], %s239
        // Predicated region
        $region37: #{tpu_custom_call.1} parent=35 // pred_check
          %p241 = pneg %p59
        $region38: #{tpu_custom_call.1} parent=35 // pred_check_branch
          %243 = sbr.rel (%p241) target = $region40
        $region39: #{tpu_custom_call.1} parent=35 // pred_region
          %245 = dma.done %s237, 256
        $region40: #{tpu_custom_call.1} parent=35 // pred_fallthru
          _
        %s246 = sand.u32 %s74, 1
        %s247 = scalar_lea.sflag [#allocation6], %s246
        %s248 = sand.u32 %s74, 1
        %s249 = smul.addr %s248, 16
        %s250 = scalar_lea.vmem [#allocation5], %s249
        // Predicated region
        $region41: #{tpu_custom_call.1} parent=35 // pred_check
          %p251 = pneg %p87
        $region42: #{tpu_custom_call.1} parent=35 // pred_check_branch
          %253 = sbr.rel (%p251) target = $region44
        $region43: #{tpu_custom_call.1} parent=35 // pred_region
          %255 = dma.done %s247, 256
        $region44: #{tpu_custom_call.1} parent=35 // pred_fallthru
          _
        %s256 = sand.u32 %s46, 1
        %s257 = scalar_lea.sflag [#allocation3], %s256
        %s258 = sand.u32 %s46, 1
        %s259 = smul.addr %s258, 16
        %s260 = scalar_lea.vmem [#allocation2], %s259
        %p261 = pneg %p59
        %p262 = pneg %p56
        %s263 = sand.u32 %s74, 1
        %s264 = scalar_lea.sflag [#allocation6], %s263
        %s265 = sand.u32 %s74, 1
        %s266 = smul.addr %s265, 16
        %s267 = scalar_lea.vmem [#allocation5], %s266
        %p268 = pneg %p87
        %p269 = pneg %p84
        %p270 = pneg %p108
        %p271 = pneg %p105
        %p272 = pneg %p129
        %p273 = pneg %p126
        %p274 = pneg %p157
        %p275 = pneg %p154
        %s276 = sand.u32 %s144, 1
        %s277 = scalar_lea.sflag [#allocation4], %s276
        %s278 = sand.u32 %s144, 1
        %s279 = smul.addr %s278, 16
        %s280 = scalar_lea.vmem [#allocation7], %s279
        %v281 = vld [vmem:[%s240] sm:$0xff]
        %v282 = vld [vmem:[%s240 + $0x8] sm:$0xff]
        %v283 = vld [vmem:[%s250] sm:$0xff]
        %v284 = vld [vmem:[%s250 + $0x8] sm:$0xff]
        %287 = vrot.lane.b32.xlu0 %v281, 48
        %v288 = vpop.permute.xlu0 %287
        %289 = vrot.lane.b32.xlu0 %v282, 48
        %v290 = vpop.permute.xlu0 %289
        %vm293 = vcmask 392192
        %v294 = vsel %vm293, %v283, %v288
        %v295 = vsel %vm293, %v284, %v290
        %v296 = vsel %vm293, %v288, %v283
        %v297 = vsel %vm293, %v290, %v284
        %vm298 = vcmask 785408
        %v299 = vsel %vm298, %v296, -inf
        %v300 = vsel %vm298, %v297, -inf
        %v301 = vlaneseq
        %v302 = vand.u32 %v301, 127
        %v303 = vadd.s32 %v302, 128
        %vm304 = vcmp.lt.s32.totalorder %v302, 0
        %v305 = vsub.s32 0, %v302
        %v306 = vsel %vm304, %v305, %v302
        %v307 = vshrl.u32 %v306, 4
        %v308 = vand.u32 %v306, 15
        %v309 = vsub.s32 0, %v308
        %v310 = vsel %vm304, %v309, %v308
        %vm311 = vcmp.lt.s32.totalorder %v303, 0
        %v312 = vsub.s32 0, %v303
        %v313 = vsel %vm311, %v312, %v303
        %v314 = vshrl.u32 %v313, 4
        %v315 = vand.u32 %v313, 15
        %v316 = vsub.s32 0, %v315
        %v317 = vsel %vm311, %v316, %v315
        %vm318 = vcmp.ne.s32.totalorder %v310, 0
        %vm319 = vcmp.ne.s32.totalorder %v317, 0
        %vm320 = vcmp.lt.s32.totalorder %v310, 0
        %vm321 = vcmp.lt.s32.totalorder %v317, 0
        %vm322 = vmand %vm320, %vm318
        %vm323 = vmand %vm321, %vm319
        %v324 = vadd.s32 %v310, 16
        %v325 = vadd.s32 %v317, 16
        %v326 = vsel %vm322, %v324, %v310
        %v327 = vsel %vm323, %v325, %v317
        %vm328 = vcmp.lt.s32.totalorder %v326, 15
        %vm329 = vcmp.lt.s32.totalorder %v327, 15
        %vm330 = vcmp.gt.s32.totalorder %v326, 0
        %vm331 = vcmp.gt.s32.totalorder %v327, 0
        %332 = vrot.lane.b32.xlu0 %v294, 112
        %v333 = vpop.permute.xlu0 %332
        %334 = vrot.lane.b32.xlu0 %v295, 112
        %v335 = vpop.permute.xlu0 %334
        %336 = vrot.lane.b32.xlu0 %v299, 112
        %v337 = vpop.permute.xlu0 %336
        %338 = vrot.lane.b32.xlu0 %v300, 112
        %v339 = vpop.permute.xlu0 %338
        %vm340 = vcmp.lt.s32.totalorder %v302, 112
        %v341 = vsel %vm340, %v333, %v337
        %v342 = vsel %vm340, %v335, %v339
        %v343 = vsel %vm340, %v337, %v333
        %v344 = vsel %vm340, %v339, %v335
        %345 = vrot.lane.b32.xlu0 %v294, 16
        %v346 = vpop.permute.xlu0 %345
        %347 = vrot.lane.b32.xlu0 %v295, 16
        %v348 = vpop.permute.xlu0 %347
        %349 = vrot.lane.b32.xlu0 %v299, 16
        %v350 = vpop.permute.xlu0 %349
        %351 = vrot.lane.b32.xlu0 %v300, 16
        %v352 = vpop.permute.xlu0 %351
        %vm353 = vcmp.lt.s32.totalorder %v302, 16
        %v354 = vsel %vm353, %v346, %v350
        %v355 = vsel %vm353, %v348, %v352
        %v356 = vsel %vm353, %v350, %v346
        %v357 = vsel %vm353, %v352, %v348
        %v358 = vmax.f32 %v341, %v356
        %v359 = vmax.f32 %v343, %v354
        %v360 = vmax.f32 %v342, %v357
        %v361 = vmax.f32 %v344, %v355
        %v362 = vmax.f32 %v294, %v358
        %v363 = vmax.f32 %v299, %v359
        %v364 = vmax.f32 %v295, %v360
        %v365 = vmax.f32 %v300, %v361
        %370 = vrot.lane.b32.xlu0 %v362, 127
        %v371 = vpop.permute.xlu0 %370
        %372 = vrot.lane.b32.xlu0 %v363, 127
        %v373 = vpop.permute.xlu0 %372
        %374 = vrot.lane.b32.xlu0 %v364, 127
        %v375 = vpop.permute.xlu0 %374
        %376 = vrot.lane.b32.xlu0 %v365, 127
        %v377 = vpop.permute.xlu0 %376
        %vm378 = vcmask 1039360
        %v379 = vsel %vm378, %v371, %v373
        %v380 = vsel %vm378, %v375, %v377
        %v387 = vsel %vm378, %v373, %v371
        %v388 = vsel %vm378, %v377, %v375
        %v389 = vsel %vm328, 1, 0
        %v390 = vsel %vm329, 1, 0
        %vm391 = vcmp.eq.s32.totalorder %v389, 1
        %vm392 = vcmp.eq.s32.totalorder %v390, 1
        %v393 = vsel %vm391, %v379, -inf
        %v394 = vsel %vm392, %v387, -inf
        %v395 = vsel %vm391, %v380, -inf
        %v396 = vsel %vm392, %v388, -inf
        %397 = vrot.lane.b32.xlu0 %v363, 1
        %v398 = vpop.permute.xlu0 %397
        %399 = vrot.lane.b32.xlu0 %v365, 1
        %v400 = vpop.permute.xlu0 %399
        %403 = vrot.lane.b32.xlu0 %v362, 1
        %v404 = vpop.permute.xlu0 %403
        %405 = vrot.lane.b32.xlu0 %v364, 1
        %v406 = vpop.permute.xlu0 %405
        %vm407 = vcmask 7168
        %v408 = vsel %vm407, %v404, %v398
        %v409 = vsel %vm407, %v406, %v400
        %v414 = vsel %vm407, %v398, %v404
        %v415 = vsel %vm407, %v400, %v406
        %v416 = vsel %vm330, 1, 0
        %v417 = vsel %vm331, 1, 0
        %vm418 = vcmp.eq.s32.totalorder %v416, 1
        %vm419 = vcmp.eq.s32.totalorder %v417, 1
        %v420 = vsel %vm418, %v414, -inf
        %v421 = vsel %vm419, %v408, -inf
        %v422 = vsel %vm418, %v415, -inf
        %v423 = vsel %vm419, %v409, -inf
        %v424 = vmax.f32 %v393, %v420
        %v425 = vmax.f32 %v394, %v421
        %v426 = vmax.f32 %v395, %v422
        %v427 = vmax.f32 %v396, %v423
        %v428 = vmax.f32 %v362, %v424
        %v429 = vmax.f32 %v363, %v425
        %v430 = vmax.f32 %v364, %v426
        %v431 = vmax.f32 %v365, %v427
        %432 = vrot.lane.b32.xlu0 %v428, 112
        %v433 = vpop.permute.xlu0 %432
        %434 = vrot.lane.b32.xlu0 %v430, 112
        %v435 = vpop.permute.xlu0 %434
        %436 = vrot.lane.b32.xlu0 %v429, 112
        %v437 = vpop.permute.xlu0 %436
        %438 = vrot.lane.b32.xlu0 %v431, 112
        %v439 = vpop.permute.xlu0 %438
        %v440 = vsel %vm340, %v433, %v437
        %v441 = vsel %vm340, %v435, %v439
        %v442 = vsel %vm340, %v437, %v433
        %v443 = vsel %vm340, %v439, %v435
        %444 = vrot.lane.b32.xlu0 %v428, 16
        %v445 = vpop.permute.xlu0 %444
        %446 = vrot.lane.b32.xlu0 %v430, 16
        %v447 = vpop.permute.xlu0 %446
        %448 = vrot.lane.b32.xlu0 %v429, 16
        %v449 = vpop.permute.xlu0 %448
        %450 = vrot.lane.b32.xlu0 %v431, 16
        %v451 = vpop.permute.xlu0 %450
        %v452 = vsel %vm353, %v445, %v449
        %v453 = vsel %vm353, %v447, %v451
        %v454 = vsel %vm353, %v449, %v445
        %v455 = vsel %vm353, %v451, %v447
        %v456 = vmax.f32 %v440, %v454
        %v457 = vmax.f32 %v442, %v452
        %v458 = vmax.f32 %v441, %v455
        %v459 = vmax.f32 %v443, %v453
        %v460 = vmax.f32 %v428, %v456
        %v461 = vmax.f32 %v429, %v457
        %v462 = vmax.f32 %v430, %v458
        %v463 = vmax.f32 %v431, %v459
        %468 = vrot.lane.b32.xlu0 %v460, 127
        %v469 = vpop.permute.xlu0 %468
        %470 = vrot.lane.b32.xlu0 %v461, 127
        %v471 = vpop.permute.xlu0 %470
        %472 = vrot.lane.b32.xlu0 %v462, 127
        %v473 = vpop.permute.xlu0 %472
        %474 = vrot.lane.b32.xlu0 %v463, 127
        %v475 = vpop.permute.xlu0 %474
        %v476 = vsel %vm378, %v469, %v471
        %v477 = vsel %vm378, %v473, %v475
        %v484 = vsel %vm378, %v471, %v469
        %v485 = vsel %vm378, %v475, %v473
        %v486 = vsel %vm391, %v476, -inf
        %v487 = vsel %vm392, %v484, -inf
        %v488 = vsel %vm391, %v477, -inf
        %v489 = vsel %vm392, %v485, -inf
        %490 = vrot.lane.b32.xlu0 %v461, 1
        %v491 = vpop.permute.xlu0 %490
        %492 = vrot.lane.b32.xlu0 %v463, 1
        %v493 = vpop.permute.xlu0 %492
        %496 = vrot.lane.b32.xlu0 %v460, 1
        %v497 = vpop.permute.xlu0 %496
        %498 = vrot.lane.b32.xlu0 %v462, 1
        %v499 = vpop.permute.xlu0 %498
        %v500 = vsel %vm407, %v497, %v491
        %v501 = vsel %vm407, %v499, %v493
        %v506 = vsel %vm407, %v491, %v497
        %v507 = vsel %vm407, %v493, %v499
        %v508 = vsel %vm418, %v506, -inf
        %v509 = vsel %vm419, %v500, -inf
        %v510 = vsel %vm418, %v507, -inf
        %v511 = vsel %vm419, %v501, -inf
        %v512 = vmax.f32 %v486, %v508
        %v513 = vmax.f32 %v487, %v509
        %v514 = vmax.f32 %v488, %v510
        %v515 = vmax.f32 %v489, %v511
        %v516 = vmax.f32 %v460, %v512
        %v517 = vmax.f32 %v461, %v513
        %v518 = vmax.f32 %v462, %v514
        %v519 = vmax.f32 %v463, %v515
        %520 = vrot.lane.b32.xlu0 %v516, 112
        %v521 = vpop.permute.xlu0 %520
        %522 = vrot.lane.b32.xlu0 %v518, 112
        %v523 = vpop.permute.xlu0 %522
        %524 = vrot.lane.b32.xlu0 %v517, 112
        %v525 = vpop.permute.xlu0 %524
        %526 = vrot.lane.b32.xlu0 %v519, 112
        %v527 = vpop.permute.xlu0 %526
        %v528 = vsel %vm340, %v521, %v525
        %v529 = vsel %vm340, %v523, %v527
        %v530 = vsel %vm340, %v525, %v521
        %v531 = vsel %vm340, %v527, %v523
        %532 = vrot.lane.b32.xlu0 %v516, 16
        %v533 = vpop.permute.xlu0 %532
        %534 = vrot.lane.b32.xlu0 %v518, 16
        %v535 = vpop.permute.xlu0 %534
        %536 = vrot.lane.b32.xlu0 %v517, 16
        %v537 = vpop.permute.xlu0 %536
        %538 = vrot.lane.b32.xlu0 %v519, 16
        %v539 = vpop.permute.xlu0 %538
        %v540 = vsel %vm353, %v533, %v537
        %v541 = vsel %vm353, %v535, %v539
        %v542 = vsel %vm353, %v537, %v533
        %v543 = vsel %vm353, %v539, %v535
        %v544 = vmax.f32 %v528, %v542
        %v545 = vmax.f32 %v530, %v540
        %v546 = vmax.f32 %v529, %v543
        %v547 = vmax.f32 %v531, %v541
        %v548 = vmax.f32 %v516, %v544
        %v549 = vmax.f32 %v517, %v545
        %v550 = vmax.f32 %v518, %v546
        %v551 = vmax.f32 %v519, %v547
        %556 = vrot.lane.b32.xlu0 %v548, 127
        %v557 = vpop.permute.xlu0 %556
        %558 = vrot.lane.b32.xlu0 %v549, 127
        %v559 = vpop.permute.xlu0 %558
        %560 = vrot.lane.b32.xlu0 %v550, 127
        %v561 = vpop.permute.xlu0 %560
        %562 = vrot.lane.b32.xlu0 %v551, 127
        %v563 = vpop.permute.xlu0 %562
        %v564 = vsel %vm378, %v557, %v559
        %v565 = vsel %vm378, %v561, %v563
        %v572 = vsel %vm378, %v559, %v557
        %v573 = vsel %vm378, %v563, %v561
        %v574 = vsel %vm391, %v564, -inf
        %v575 = vsel %vm392, %v572, -inf
        %v576 = vsel %vm391, %v565, -inf
        %v577 = vsel %vm392, %v573, -inf
        %578 = vrot.lane.b32.xlu0 %v549, 1
        %v579 = vpop.permute.xlu0 %578
        %580 = vrot.lane.b32.xlu0 %v551, 1
        %v581 = vpop.permute.xlu0 %580
        %584 = vrot.lane.b32.xlu0 %v548, 1
        %v585 = vpop.permute.xlu0 %584
        %586 = vrot.lane.b32.xlu0 %v550, 1
        %v587 = vpop.permute.xlu0 %586
        %v588 = vsel %vm407, %v585, %v579
        %v589 = vsel %vm407, %v587, %v581
        %v594 = vsel %vm407, %v579, %v585
        %v595 = vsel %vm407, %v581, %v587
        %v596 = vsel %vm418, %v594, -inf
        %v597 = vsel %vm419, %v588, -inf
        %v598 = vsel %vm418, %v595, -inf
        %v599 = vsel %vm419, %v589, -inf
        %v600 = vmax.f32 %v574, %v596
        %v601 = vmax.f32 %v575, %v597
        %v602 = vmax.f32 %v576, %v598
        %v603 = vmax.f32 %v577, %v599
        %v604 = vmax.f32 %v548, %v600
        %v605 = vmax.f32 %v549, %v601
        %v606 = vmax.f32 %v550, %v602
        %v607 = vmax.f32 %v551, %v603
        %612 = vrot.lane.b32.xlu0 %v428, 80
        %v613 = vpop.permute.xlu0 %612
        %614 = vrot.lane.b32.xlu0 %v429, 80
        %v615 = vpop.permute.xlu0 %614
        %616 = vrot.lane.b32.xlu0 %v430, 80
        %v617 = vpop.permute.xlu0 %616
        %618 = vrot.lane.b32.xlu0 %v431, 80
        %v619 = vpop.permute.xlu0 %618
        %vm620 = vcmask 654336
        %v621 = vsel %vm620, %v613, %v615
        %v622 = vsel %vm620, %v617, %v619
        %629 = vrot.lane.b32.xlu0 %v516, 80
        %v630 = vpop.permute.xlu0 %629
        %631 = vrot.lane.b32.xlu0 %v517, 80
        %v632 = vpop.permute.xlu0 %631
        %633 = vrot.lane.b32.xlu0 %v518, 80
        %v634 = vpop.permute.xlu0 %633
        %635 = vrot.lane.b32.xlu0 %v519, 80
        %v636 = vpop.permute.xlu0 %635
        %v637 = vsel %vm620, %v630, %v632
        %v638 = vsel %vm620, %v634, %v636
        %645 = vrot.lane.b32.xlu0 %v604, 80
        %v646 = vpop.permute.xlu0 %645
        %647 = vrot.lane.b32.xlu0 %v605, 80
        %v648 = vpop.permute.xlu0 %647
        %649 = vrot.lane.b32.xlu0 %v606, 80
        %v650 = vpop.permute.xlu0 %649
        %651 = vrot.lane.b32.xlu0 %v607, 80
        %v652 = vpop.permute.xlu0 %651
        %v653 = vsel %vm620, %v646, %v648
        %v654 = vsel %vm620, %v650, %v652
        %v657 = vld [vmem:[%s2] sm:$0xff]
        %v658 = vld [vmem:[%s2 + $0x8] sm:$0xff]
        %v659 = vld [vmem:[%s3] sm:$0xff]
        %v660 = vld [vmem:[%s3 + $0x8] sm:$0xff]
        %662 = vset.pattern.permute.xlu0 0
        %663 = vperm.xlu0 %662, %v659
        %v664 = vpop.permute.xlu0 %663
        %667 = vset.pattern.permute.xlu0 0
        %668 = vperm.xlu0 %667, %v660
        %v669 = vpop.permute.xlu0 %668
        %vm671 = vcmask 523264
        %v673 = vsel %vm671, %v657, 0
        %v676 = vsel %vm671, %v658, 0
        %678 = vmatpush.msra.mxu0 0.0
        %679 = vmatpush.msra.mxu0 0.0
        %680 = vmatpush.msra.mxu0 0.0
        %681 = vmatpush.msra.mxu0 0.0
        %682 = vmatpush.msra.mxu0 0.0
        %683 = vmatpush.msra.mxu0 0.0
        %684 = vmatpush.msra.mxu0 0.0
        %685 = vmatpush.msra.mxu0 0.0
        %686 = vmatpush.msra.mxu0 %v654
        %687 = vmatpush.msra.mxu0 %v653
        %688 = vmatpush.msra.mxu0 %v638
        %689 = vmatpush.msra.mxu0 %v637
        %690 = vmatpush.msra.mxu0 %v622
        %691 = vmatpush.msra.mxu0 %v621
        %692 = vmatpush.msra.mxu0 %v282
        %693 = vmatpush.msra.mxu0 %v281
        %694 = vmatmul.f32.gmra.mxu0 %v673
        %v695 = vpop.f32.mrf.mxu0
        %v696 = vadd.f32 %v664, %v695
        %697 = vmatmul.f32.gmra.mxu0 %v676
        %v698 = vpop.f32.mrf.mxu0
        %v699 = vadd.f32 %v669, %v698
        %700 = vdwg.mxu0
        %v701 = vxor.u32 %v696, 2147483648
        %v702 = vxor.u32 %v699, 2147483648
        %v703 = vmul.f32 %v701, 1.442695
        %v704 = vpow.pop %v703
        %v705 = vmul.f32 %v702, 1.442695
        %v706 = vpow.pop %v705
        %v707 = vadd.f32 %v704, 1.0
        %v708 = vadd.f32 %v706, 1.0
        %v709 = vrcp.pop %v707
        %v710 = vmul.f32 %v707, %v709
        %v711 = vsub.f32 1.0, %v710
        %v712 = vmul.f32 %v709, %v711
        %v713 = vadd.f32 %v709, %v712
        %vm714 = vweird.f32 %v707
        %vm715 = vweird.f32 %v709
        %vm716 = vmor %vm714, %vm715
        %v717 = vsel %vm716, %v709, %v713
        %v718 = vand.u32 2147483647, %v707
        %vm719 = vcmp.eq.f32.partialorder %v718, 8.507059e+37
        %v720 = vand.u32 %v707, 2147483648
        %v721 = vor.u32 1.1754944e-38, %v720
        %v722 = vsel %vm719, %v721, %v717
        %v723 = vmul.f32 1.0, %v722
        %v724 = vrcp.pop %v708
        %v725 = vmul.f32 %v708, %v724
        %v726 = vsub.f32 1.0, %v725
        %v727 = vmul.f32 %v724, %v726
        %v728 = vadd.f32 %v724, %v727
        %vm729 = vweird.f32 %v708
        %vm730 = vweird.f32 %v724
        %vm731 = vmor %vm729, %vm730
        %v732 = vsel %vm731, %v724, %v728
        %v733 = vand.u32 2147483647, %v708
        %vm734 = vcmp.eq.f32.partialorder %v733, 8.507059e+37
        %v735 = vand.u32 %v708, 2147483648
        %v736 = vor.u32 1.1754944e-38, %v735
        %v737 = vsel %vm734, %v736, %v732
        %v738 = vmul.f32 1.0, %v737
        %v739 = vmul.f32 %v696, %v723
        %v740 = vmul.f32 %v699, %v738
        %741 = vst [vmem:[%s280] sm:$0xff] %v739
        %742 = vst [vmem:[%s280 + $0x8] sm:$0xff] %v740
        %s743 = sand.u32 %s144, 1
        %s744 = scalar_lea.sflag [#allocation4], %s743
        %s745 = sand.u32 %s144, 1
        %s746 = smul.addr %s745, 16
        %s747 = scalar_lea.vmem [#allocation7], %s746
        // Predicated region
        $region45: #{tpu_custom_call.1} parent=35 // pred_check
          %p748 = pneg %p154
        $region46: #{tpu_custom_call.1} parent=35 // pred_check_branch
          %750 = sbr.rel (%p748) target = $region48
        $region47: #{tpu_custom_call.1} parent=35 // pred_region
          %752 = vsyncadd %s744, 0
          %s753 = smul.addr %s28, 4
          %s754 = sadd.s32 %s29, %s753
          %s755 = smul.addr %s754, 8
          %s756 = scalar_lea.hbm %s4, %s755
          %s757 = sshll.u32 %s747, 4
          %s758 = int_to_ptr.vmem [resolvable:$true] %s757
          %s759 = sshll.u32 %s756, 4
          %s760 = int_to_ptr.hbm [resolvable:$true] %s759
          %765 = dma.vmem_to_hbm [thread:$0]  %s758, 256, %s760, %s744, 128, 256, 8
        $region48: #{tpu_custom_call.1} parent=35 // pred_fallthru
          _
      $region36: #{tpu_custom_call.1} parent=5 // pred_fallthru
        _
      %p766 = scmp.le.s32.totalorder 2, %s19
      // Predicated region
      $region49: #{tpu_custom_call.1} parent=5 // pred_check
        %p767 = pneg %p766
      $region50: #{tpu_custom_call.1} parent=5 // pred_check_branch
        %769 = sbr.rel (%p767) target = $region52
      $region51: #{tpu_custom_call.1} parent=5 // pred_region
        %s770 = ssub.s32 %s19, 2
        // Predicated region
        $region53: #{tpu_custom_call.1} parent=51 // pred_check
          %p771 = pneg %p160
        $region54: #{tpu_custom_call.1} parent=51 // pred_check_branch
          %773 = sbr.rel (%p771) target = $region56
        $region55: #{tpu_custom_call.1} parent=51 // pred_region
          %s774 = sand.u32 %s145, 1
          %s775 = scalar_lea.sflag [#allocation4], %s774
          %s776 = sand.u32 %s145, 1
          %s777 = smul.addr %s776, 16
          %s778 = scalar_lea.vmem [#allocation7], %s777
          %780 = dma.done %s775, 256
        $region56: #{tpu_custom_call.1} parent=51 // pred_fallthru
          _
      $region52: #{tpu_custom_call.1} parent=5 // pred_fallthru
        _
    $region6: #{tpu_custom_call.1} parent=1 // loop_footer
      %s23 = sadd.s32 1, %s19
    $region7: #{tpu_custom_call.1} parent=1 // loop_footer_branch
      %18 = sbr.rel target = $region3
    $region8: #{tpu_custom_call.1} parent=1 // loop_exit
      _
    %781 = vsyncpa [#allocation3], 1
    %s782 = scalar_lea.sflag [#allocation3], 1
    %783 = vsyncpa %s782, 1
    %784 = vsyncpa [#allocation6], 1
    %s785 = scalar_lea.sflag [#allocation6], 1
    %786 = vsyncpa %s785, 1
    %787 = vsyncpa [#allocation4], 1
    %s788 = scalar_lea.sflag [#allocation4], 1
    %789 = vsyncpa %s788, 1

// kernel: tpu_custom_call.1
$region0: #{tpu_custom_call.1}
  #allocation0 [shape = 'u32[]', space=smem, size = 0x4, offset = 0x4, fixed_abs, tag = 'smem constant byte address 0x4 - core index']
  #allocation1 [shape = 'u32[72,128]{1,0:T(1,128)}', space=vmem, size = 0x9000, scoped, tag = 'internal scratch']
  %s0 = inlined_call_operand.hbm [shape: f32[2,16,256], index: 0, kind: input, shape index: {}]
  %s1 = inlined_call_operand.hbm [shape: f32[2,2,16,96], index: 1, kind: input, shape index: {}]
  %s2 = inlined_call_operand.vmem [shape: f32[16,64], index: 2, kind: input, shape index: {}]
  %s3 = inlined_call_operand.vmem [shape: f32[16,1], index: 3, kind: input, shape index: {}]
  %s4 = inlined_call_operand.hbm [shape: f32[2,16,256], index: 4, kind: output, shape index: {}]
  %s5 = sld [smem:[#allocation0]]
  $region57: #{tpu_custom_call.1} parent=0
    _
  %s7 = ssub.s32 1, %s5
  %s8 = scalar_select 0, %s7, %s5
  $region1: #{tpu_custom_call.1} parent=0
    #allocation2 [shape = 'u8[16384]{0}', space=vmem, size = 0x4000, scoped, tag = 'input window, operand 0']
    #allocation3 [shape = 's32[2]{0}', space=sflag, size = 0x8, scoped, tag = 'scoped memory for tpu_custom_call.1']
    #allocation4 [shape = 's32[2]{0}', space=sflag, size = 0x8, scoped, tag = 'scoped memory for tpu_custom_call.1']
    #allocation5 [shape = 'u8[16384]{0}', space=vmem, size = 0x4000, scoped, tag = 'input window, operand 1']
    #allocation6 [shape = 's32[2]{0}', space=sflag, size = 0x8, scoped, tag = 'scoped memory for tpu_custom_call.1']
    #allocation7 [shape = 'u8[16384]{0}', space=vmem, size = 0x4000, scoped, tag = 'output window, operand 0']
    %9 = vsyncpa [#allocation3], 0
    %s10 = scalar_lea.sflag [#allocation3], 1
    %11 = vsyncpa %s10, 0
    %12 = vsyncpa [#allocation6], 0
    %s13 = scalar_lea.sflag [#allocation6], 1
    %14 = vsyncpa %s13, 0
    %15 = vsyncpa [#allocation4], 0
    %s16 = scalar_lea.sflag [#allocation4], 1
    %17 = vsyncpa %s16, 0
    loop: start=0, step=1, limit=6
    $region2: #{tpu_custom_call.1} parent=1 // loop_pre_header
      _
    $region3: #{tpu_custom_call.1} parent=1 // loop_header
      %s19 = sphi 0, %s23
      %p20 = scmp.ge.s32.totalorder %s19, 6
      %s26 = sphi 0, %s38
      %s27 = sphi 0, %s34
      %s28 = sphi 0, %s26
      %s29 = sphi 0, %s27
      %s30 = sphi 0, %s28
      %s31 = sphi 0, %s29
      %s43 = sphi 0, %s45
      %s46 = sphi 0, %s43
      %s47 = sphi 0, %s46
      %s63 = sphi 0, %s47
      %s71 = sphi 0, %s73
      %s74 = sphi 0, %s71
      %s75 = sphi 0, %s74
      %s91 = sphi 0, %s75
      %s95 = sphi 0, %s95
      %s97 = sphi 0, %s95
      %s98 = sphi 0, %s97
      %s112 = sphi 0, %s98
      %s116 = sphi 0, %s116
      %s118 = sphi 0, %s116
      %s119 = sphi 0, %s118
      %s133 = sphi 0, %s119
      %s141 = sphi 0, %s143
      %s144 = sphi 0, %s141
      %s145 = sphi 0, %s144
      %s161 = sphi 0, %s145
    $region4: #{tpu_custom_call.1} parent=1 // loop_header_branch
      %22 = sbr.rel (%p20) target = $region8
    $region5: #{tpu_custom_call.1} parent=1 // loop_body
      %s24 = ssub.s32 %s19, 1
      %s25 = ssub.s32 %s19, 2
      %s32 = sadd.s32 1, %s27
      %p33 = scmp.ge.s32.totalorder %s32, 2
      %s34 = scalar_select %p33, 0, %s32
      %s35 = sadd.s32 1, %s26
      %s36 = scalar_select %p33, %s35, %s26
      %p37 = scmp.ge.s32.totalorder %s36, 2
      %s38 = scalar_select %p37, 0, %s36
      %s39 = ssub.s32 %s26, %s38
      %s40 = ssub.s32 %s27, %s34
      %s41 = sor.u32 %s39, %s40
      %p42 = scmp.eq.s32.totalorder %s41, 0
      %s44 = sadd.s32 %s43, 1
      %s45 = scalar_select %p42, %s43, %s44
      %p48 = pneg %p42
      %p49 = scmp.eq.s32.totalorder %s19, 3
      %p50 = por %p48, %p49
      %p51 = scmp.ne.s32.totalorder %s43, %s46
      %p52 = scmp.eq.s32.totalorder %s19, 0
      %p53 = por %p51, %p52
      %p54 = scmp.ne.s32.totalorder %s43, %s46
      %p55 = scmp.eq.s32.totalorder %s24, 3
      %p56 = por %p54, %p55
      %p57 = scmp.ne.s32.totalorder %s46, %s47
      %p58 = scmp.eq.s32.totalorder %s24, 0
      %p59 = por %p57, %p58
      %p60 = scmp.ne.s32.totalorder %s46, %s47
      %p61 = scmp.eq.s32.totalorder %s25, 3
      %p62 = por %p60, %p61
      %p64 = scmp.ne.s32.totalorder %s47, %s63
      %p65 = scmp.eq.s32.totalorder %s25, 0
      %p66 = por %p64, %p65
      %s67 = ssub.s32 %s26, %s38
      %s68 = ssub.s32 %s27, %s34
      %s69 = sor.u32 %s67, %s68
      %p70 = scmp.eq.s32.totalorder %s69, 0
      %s72 = sadd.s32 %s71, 1
      %s73 = scalar_select %p70, %s71, %s72
      %p76 = pneg %p70
      %p77 = scmp.eq.s32.totalorder %s19, 3
      %p78 = por %p76, %p77
      %p79 = scmp.ne.s32.totalorder %s71, %s74
      %p80 = scmp.eq.s32.totalorder %s19, 0
      %p81 = por %p79, %p80
      %p82 = scmp.ne.s32.totalorder %s71, %s74
      %p83 = scmp.eq.s32.totalorder %s24, 3
      %p84 = por %p82, %p83
      %p85 = scmp.ne.s32.totalorder %s74, %s75
      %p86 = scmp.eq.s32.totalorder %s24, 0
      %p87 = por %p85, %p86
      %p88 = scmp.ne.s32.totalorder %s74, %s75
      %p89 = scmp.eq.s32.totalorder %s25, 3
      %p90 = por %p88, %p89
      %p92 = scmp.ne.s32.totalorder %s75, %s91
      %p93 = scmp.eq.s32.totalorder %s25, 0
      %p94 = por %p92, %p93
      %s96 = sadd.s32 %s95, 1
      %p99 = scmp.eq.s32.totalorder %s19, 3
      %p100 = scmp.ne.s32.totalorder %s95, %s97
      %p101 = scmp.eq.s32.totalorder %s19, 0
      %p102 = por %p100, %p101
      %p103 = scmp.ne.s32.totalorder %s95, %s97
      %p104 = scmp.eq.s32.totalorder %s24, 3
      %p105 = por %p103, %p104
      %p106 = scmp.ne.s32.totalorder %s97, %s98
      %p107 = scmp.eq.s32.totalorder %s24, 0
      %p108 = por %p106, %p107
      %p109 = scmp.ne.s32.totalorder %s97, %s98
      %p110 = scmp.eq.s32.totalorder %s25, 3
      %p111 = por %p109, %p110
      %p113 = scmp.ne.s32.totalorder %s98, %s112
      %p114 = scmp.eq.s32.totalorder %s25, 0
      %p115 = por %p113, %p114
      %s117 = sadd.s32 %s116, 1
      %p120 = scmp.eq.s32.totalorder %s19, 3
      %p121 = scmp.ne.s32.totalorder %s116, %s118
      %p122 = scmp.eq.s32.totalorder %s19, 0
      %p123 = por %p121, %p122
      %p124 = scmp.ne.s32.totalorder %s116, %s118
      %p125 = scmp.eq.s32.totalorder %s24, 3
      %p126 = por %p124, %p125
      %p127 = scmp.ne.s32.totalorder %s118, %s119
      %p128 = scmp.eq.s32.totalorder %s24, 0
      %p129 = por %p127, %p128
      %p130 = scmp.ne.s32.totalorder %s118, %s119
      %p131 = scmp.eq.s32.totalorder %s25, 3
      %p132 = por %p130, %p131
      %p134 = scmp.ne.s32.totalorder %s119, %s133
      %p135 = scmp.eq.s32.totalorder %s25, 0
      %p136 = por %p134, %p135
      %s137 = ssub.s32 %s26, %s38
      %s138 = ssub.s32 %s27, %s34
      %s139 = sor.u32 %s137, %s138
      %p140 = scmp.eq.s32.totalorder %s139, 0
      %s142 = sadd.s32 %s141, 1
      %s143 = scalar_select %p140, %s141, %s142
      %p146 = pneg %p140
      %p147 = scmp.eq.s32.totalorder %s19, 3
      %p148 = por %p146, %p147
      %p149 = scmp.ne.s32.totalorder %s141, %s144
      %p150 = scmp.eq.s32.totalorder %s19, 0
      %p151 = por %p149, %p150
      %p152 = scmp.ne.s32.totalorder %s141, %s144
      %p153 = scmp.eq.s32.totalorder %s24, 3
      %p154 = por %p152, %p153
      %p155 = scmp.ne.s32.totalorder %s144, %s145
      %p156 = scmp.eq.s32.totalorder %s24, 0
      %p157 = por %p155, %p156
      %p158 = scmp.ne.s32.totalorder %s144, %s145
      %p159 = scmp.eq.s32.totalorder %s25, 3
      %p160 = por %p158, %p159
      %p162 = scmp.ne.s32.totalorder %s145, %s161
      %p163 = scmp.eq.s32.totalorder %s25, 0
      %p164 = por %p162, %p163
      %p165 = scmp.le.s32.totalorder 1, %s19
      %p166 = scmp.lt.s32.totalorder %s19, 5
      %p167 = pnand %p165, %p166
      %p168 = pneg %p167
      // Predicated region
      $region9: #{tpu_custom_call.1} parent=5 // pred_check
        _
      $region10: #{tpu_custom_call.1} parent=5 // pred_check_branch
        %170 = sbr.rel (%p167) target = $region12
      $region11: #{tpu_custom_call.1} parent=5 // pred_region
        %s171 = ssub.s32 %s19, 1
        // Predicated region
        $region13: #{tpu_custom_call.1} parent=11 // pred_check
          %p172 = pneg %p108
        $region14: #{tpu_custom_call.1} parent=11 // pred_check_branch
          %174 = sbr.rel (%p172) target = $region16
        $region15: #{tpu_custom_call.1} parent=11 // pred_region
          _
        $region16: #{tpu_custom_call.1} parent=11 // pred_fallthru
          _
        // Predicated region
        $region17: #{tpu_custom_call.1} parent=11 // pred_check
          %p175 = pneg %p129
        $region18: #{tpu_custom_call.1} parent=11 // pred_check_branch
          %177 = sbr.rel (%p175) target = $region20
        $region19: #{tpu_custom_call.1} parent=11 // pred_region
          _
        $region20: #{tpu_custom_call.1} parent=11 // pred_fallthru
          _
      $region12: #{tpu_custom_call.1} parent=5 // pred_fallthru
        _
      %p178 = scmp.lt.s32.totalorder %s19, 4
      // Predicated region
      $region21: #{tpu_custom_call.1} parent=5 // pred_check
        %p179 = pneg %p178
      $region22: #{tpu_custom_call.1} parent=5 // pred_check_branch
        %181 = sbr.rel (%p179) target = $region24
      $region23: #{tpu_custom_call.1} parent=5 // pred_region
        // Predicated region
        $region25: #{tpu_custom_call.1} parent=23 // pred_check
          %p182 = pneg %p53
        $region26: #{tpu_custom_call.1} parent=23 // pred_check_branch
          %184 = sbr.rel (%p182) target = $region28
        $region27: #{tpu_custom_call.1} parent=23 // pred_region
          %s185 = sand.u32 %s43, 1
          %s186 = scalar_lea.sflag [#allocation3], %s185
          %s187 = sand.u32 %s43, 1
          %s188 = smul.addr %s187, 16
          %s189 = scalar_lea.vmem [#allocation2], %s188
          %191 = vsyncadd %s186, 0
          %s192 = smul.addr %s26, 4
          %s193 = sadd.s32 %s27, %s192
          %s194 = smul.addr %s193, 8
          %s195 = scalar_lea.hbm %s0, %s194
          %s196 = sshll.u32 %s195, 4
          %s197 = int_to_ptr.hbm [resolvable:$true] %s196
          %s198 = sshll.u32 %s189, 4
          %s199 = int_to_ptr.vmem [resolvable:$true] %s198
          %204 = dma.hbm_to_vmem [thread:$0]  %s197, 256, %s199, %s186, 256, 128, 8
        $region28: #{tpu_custom_call.1} parent=23 // pred_fallthru
          _
        // Predicated region
        $region29: #{tpu_custom_call.1} parent=23 // pred_check
          %p205 = pneg %p81
        $region30: #{tpu_custom_call.1} parent=23 // pred_check_branch
          %207 = sbr.rel (%p205) target = $region32
        $region31: #{tpu_custom_call.1} parent=23 // pred_region
          %s208 = sand.u32 %s71, 1
          %s209 = scalar_lea.sflag [#allocation6], %s208
          %s210 = sand.u32 %s71, 1
          %s211 = smul.addr %s210, 16
          %s212 = scalar_lea.vmem [#allocation5], %s211
          %214 = vsyncadd %s209, 0
          %s215 = smul.addr %s27, 2
          %s216 = smul.addr %s26, 4
          %s217 = sadd.s32 %s215, %s216
          %s218 = smul.addr %s217, 8
          %s219 = scalar_lea.hbm %s1, %s218
          %s220 = sshll.u32 %s219, 4
          %s221 = int_to_ptr.hbm [resolvable:$true] %s220
          %s222 = sshll.u32 %s212, 4
          %s223 = int_to_ptr.vmem [resolvable:$true] %s222
          %228 = dma.hbm_to_vmem [thread:$0]  %s221, 256, %s223, %s209, 128, 128, 8
        $region32: #{tpu_custom_call.1} parent=23 // pred_fallthru
          _
      $region24: #{tpu_custom_call.1} parent=5 // pred_fallthru
        _
      %p229 = scmp.le.s32.totalorder 1, %s19
      %p230 = scmp.lt.s32.totalorder %s19, 5
      %p231 = pnand %p229, %p230
      %p232 = pneg %p231
      // Predicated region
      $region33: #{tpu_custom_call.1} parent=5 // pred_check
        _
      $region34: #{tpu_custom_call.1} parent=5 // pred_check_branch
        %234 = sbr.rel (%p231) target = $region36
      $region35: #{tpu_custom_call.1} parent=5 // pred_region
        %s235 = ssub.s32 %s19, 1
        %s236 = sand.u32 %s46, 1
        %s237 = scalar_lea.sflag [#allocation3], %s236
        %s238 = sand.u32 %s46, 1
        %s239 = smul.addr %s238, 16
        %s240 = scalar_lea.vmem [#allocation2], %s239
        // Predicated region
        $region37: #{tpu_custom_call.1} parent=35 // pred_check
          %p241 = pneg %p59
        $region38: #{tpu_custom_call.1} parent=35 // pred_check_branch
          %243 = sbr.rel (%p241) target = $region40
        $region39: #{tpu_custom_call.1} parent=35 // pred_region
          %245 = dma.done %s237, 256
        $region40: #{tpu_custom_call.1} parent=35 // pred_fallthru
          _
        %s246 = sand.u32 %s74, 1
        %s247 = scalar_lea.sflag [#allocation6], %s246
        %s248 = sand.u32 %s74, 1
        %s249 = smul.addr %s248, 16
        %s250 = scalar_lea.vmem [#allocation5], %s249
        // Predicated region
        $region41: #{tpu_custom_call.1} parent=35 // pred_check
          %p251 = pneg %p87
        $region42: #{tpu_custom_call.1} parent=35 // pred_check_branch
          %253 = sbr.rel (%p251) target = $region44
        $region43: #{tpu_custom_call.1} parent=35 // pred_region
          %255 = dma.done %s247, 256
        $region44: #{tpu_custom_call.1} parent=35 // pred_fallthru
          _
        %s256 = sand.u32 %s46, 1
        %s257 = scalar_lea.sflag [#allocation3], %s256
        %s258 = sand.u32 %s46, 1
        %s259 = smul.addr %s258, 16
        %s260 = scalar_lea.vmem [#allocation2], %s259
        %p261 = pneg %p59
        %p262 = pneg %p56
        %s263 = sand.u32 %s74, 1
        %s264 = scalar_lea.sflag [#allocation6], %s263
        %s265 = sand.u32 %s74, 1
        %s266 = smul.addr %s265, 16
        %s267 = scalar_lea.vmem [#allocation5], %s266
        %p268 = pneg %p87
        %p269 = pneg %p84
        %p270 = pneg %p108
        %p271 = pneg %p105
        %p272 = pneg %p129
        %p273 = pneg %p126
        %p274 = pneg %p157
        %p275 = pneg %p154
        %s276 = sand.u32 %s144, 1
        %s277 = scalar_lea.sflag [#allocation4], %s276
        %s278 = sand.u32 %s144, 1
        %s279 = smul.addr %s278, 16
        %s280 = scalar_lea.vmem [#allocation7], %s279
        %v281 = vld [vmem:[%s240] sm:$0xff]
        %v282 = vld [vmem:[%s240 + $0x8] sm:$0xff]
        %v283 = vld [vmem:[%s250] sm:$0xff]
        %v284 = vld [vmem:[%s250 + $0x8] sm:$0xff]
        %287 = vrot.lane.b32.xlu0 %v281, 48
        %v288 = vpop.permute.xlu0 %287
        %289 = vrot.lane.b32.xlu0 %v282, 48
        %v290 = vpop.permute.xlu0 %289
        %vm293 = vcmask 392192
        %v294 = vsel %vm293, %v283, %v288
        %v295 = vsel %vm293, %v284, %v290
        %v296 = vsel %vm293, %v288, %v283
        %v297 = vsel %vm293, %v290, %v284
        %vm298 = vcmask 785408
        %v299 = vsel %vm298, %v296, -inf
        %v300 = vsel %vm298, %v297, -inf
        %v301 = vlaneseq
        %v302 = vand.u32 %v301, 127
        %v303 = vadd.s32 %v302, 128
        %vm304 = vcmp.lt.s32.totalorder %v302, 0
        %v305 = vsub.s32 0, %v302
        %v306 = vsel %vm304, %v305, %v302
        %v307 = vshrl.u32 %v306, 4
        %v308 = vand.u32 %v306, 15
        %v309 = vsub.s32 0, %v308
        %v310 = vsel %vm304, %v309, %v308
        %vm311 = vcmp.lt.s32.totalorder %v303, 0
        %v312 = vsub.s32 0, %v303
        %v313 = vsel %vm311, %v312, %v303
        %v314 = vshrl.u32 %v313, 4
        %v315 = vand.u32 %v313, 15
        %v316 = vsub.s32 0, %v315
        %v317 = vsel %vm311, %v316, %v315
        %vm318 = vcmp.ne.s32.totalorder %v310, 0
        %vm319 = vcmp.ne.s32.totalorder %v317, 0
        %vm320 = vcmp.lt.s32.totalorder %v310, 0
        %vm321 = vcmp.lt.s32.totalorder %v317, 0
        %vm322 = vmand %vm320, %vm318
        %vm323 = vmand %vm321, %vm319
        %v324 = vadd.s32 %v310, 16
        %v325 = vadd.s32 %v317, 16
        %v326 = vsel %vm322, %v324, %v310
        %v327 = vsel %vm323, %v325, %v317
        %vm328 = vcmp.lt.s32.totalorder %v326, 15
        %vm329 = vcmp.lt.s32.totalorder %v327, 15
        %vm330 = vcmp.gt.s32.totalorder %v326, 0
        %vm331 = vcmp.gt.s32.totalorder %v327, 0
        %336 = vrot.lane.b32.xlu0 %v294, 112
        %v337 = vpop.permute.xlu0 %336
        %338 = vrot.lane.b32.xlu0 %v299, 112
        %v339 = vpop.permute.xlu0 %338
        %340 = vrot.lane.b32.xlu0 %v295, 112
        %v341 = vpop.permute.xlu0 %340
        %342 = vrot.lane.b32.xlu0 %v300, 112
        %v343 = vpop.permute.xlu0 %342
        %vm344 = vcmask 916480
        %v345 = vsel %vm344, %v337, %v339
        %v346 = vsel %vm344, %v341, %v343
        %v351 = vsel %vm344, %v339, -inf
        %v352 = vsel %vm344, %v343, -inf
        %353 = vrot.lane.b32.xlu0 %v294, 16
        %v354 = vpop.permute.xlu0 %353
        %355 = vrot.lane.b32.xlu0 %v299, 16
        %v356 = vpop.permute.xlu0 %355
        %357 = vrot.lane.b32.xlu0 %v295, 16
        %v358 = vpop.permute.xlu0 %357
        %359 = vrot.lane.b32.xlu0 %v300, 16
        %v360 = vpop.permute.xlu0 %359
        %vm361 = vcmask 130048
        %v362 = vsel %vm361, %v354, %v356
        %v363 = vsel %vm361, %v358, %v360
        %v368 = vsel %vm361, -inf, %v354
        %v369 = vsel %vm361, -inf, %v358
        %v370 = vmax.f32 %v345, %v368
        %v371 = vmax.f32 %v351, %v362
        %v372 = vmax.f32 %v346, %v369
        %v373 = vmax.f32 %v352, %v363
        %v374 = vmax.f32 %v294, %v370
        %v375 = vmax.f32 %v299, %v371
        %v376 = vmax.f32 %v295, %v372
        %v377 = vmax.f32 %v300, %v373
        %382 = vrot.lane.b32.xlu0 %v374, 127
        %v383 = vpop.permute.xlu0 %382
        %384 = vrot.lane.b32.xlu0 %v375, 127
        %v385 = vpop.permute.xlu0 %384
        %386 = vrot.lane.b32.xlu0 %v376, 127
        %v387 = vpop.permute.xlu0 %386
        %388 = vrot.lane.b32.xlu0 %v377, 127
        %v389 = vpop.permute.xlu0 %388
        %vm390 = vcmask 1039360
        %v391 = vsel %vm390, %v383, %v385
        %v392 = vsel %vm390, %v387, %v389
        %v399 = vsel %vm390, %v385, %v383
        %v400 = vsel %vm390, %v389, %v387
        %v401 = vsel %vm328, 1, 0
        %v402 = vsel %vm329, 1, 0
        %vm403 = vcmp.eq.s32.totalorder %v401, 1
        %vm404 = vcmp.eq.s32.totalorder %v402, 1
        %v405 = vsel %vm403, %v391, -inf
        %v406 = vsel %vm404, %v399, -inf
        %v407 = vsel %vm403, %v392, -inf
        %v408 = vsel %vm404, %v400, -inf
        %409 = vrot.lane.b32.xlu0 %v375, 1
        %v410 = vpop.permute.xlu0 %409
        %411 = vrot.lane.b32.xlu0 %v377, 1
        %v412 = vpop.permute.xlu0 %411
        %415 = vrot.lane.b32.xlu0 %v374, 1
        %v416 = vpop.permute.xlu0 %415
        %417 = vrot.lane.b32.xlu0 %v376, 1
        %v418 = vpop.permute.xlu0 %417
        %vm419 = vcmask 7168
        %v420 = vsel %vm419, %v416, %v410
        %v421 = vsel %vm419, %v418, %v412
        %v426 = vsel %vm419, %v410, %v416
        %v427 = vsel %vm419, %v412, %v418
        %v428 = vsel %vm330, 1, 0
        %v429 = vsel %vm331, 1, 0
        %vm430 = vcmp.eq.s32.totalorder %v428, 1
        %vm431 = vcmp.eq.s32.totalorder %v429, 1
        %v432 = vsel %vm430, %v426, -inf
        %v433 = vsel %vm431, %v420, -inf
        %v434 = vsel %vm430, %v427, -inf
        %v435 = vsel %vm431, %v421, -inf
        %v436 = vmax.f32 %v405, %v432
        %v437 = vmax.f32 %v406, %v433
        %v438 = vmax.f32 %v407, %v434
        %v439 = vmax.f32 %v408, %v435
        %v440 = vmax.f32 %v374, %v436
        %v441 = vmax.f32 %v375, %v437
        %v442 = vmax.f32 %v376, %v438
        %v443 = vmax.f32 %v377, %v439
        %448 = vrot.lane.b32.xlu0 %v440, 112
        %v449 = vpop.permute.xlu0 %448
        %450 = vrot.lane.b32.xlu0 %v441, 112
        %v451 = vpop.permute.xlu0 %450
        %452 = vrot.lane.b32.xlu0 %v442, 112
        %v453 = vpop.permute.xlu0 %452
        %454 = vrot.lane.b32.xlu0 %v443, 112
        %v455 = vpop.permute.xlu0 %454
        %v456 = vsel %vm344, %v449, %v451
        %v457 = vsel %vm344, %v453, %v455
        %v462 = vsel %vm344, %v451, -inf
        %v463 = vsel %vm344, %v455, -inf
        %464 = vrot.lane.b32.xlu0 %v440, 16
        %v465 = vpop.permute.xlu0 %464
        %466 = vrot.lane.b32.xlu0 %v441, 16
        %v467 = vpop.permute.xlu0 %466
        %468 = vrot.lane.b32.xlu0 %v442, 16
        %v469 = vpop.permute.xlu0 %468
        %470 = vrot.lane.b32.xlu0 %v443, 16
        %v471 = vpop.permute.xlu0 %470
        %v472 = vsel %vm361, %v465, %v467
        %v473 = vsel %vm361, %v469, %v471
        %v478 = vsel %vm361, -inf, %v465
        %v479 = vsel %vm361, -inf, %v469
        %v480 = vmax.f32 %v456, %v478
        %v481 = vmax.f32 %v462, %v472
        %v482 = vmax.f32 %v457, %v479
        %v483 = vmax.f32 %v463, %v473
        %v484 = vmax.f32 %v440, %v480
        %v485 = vmax.f32 %v441, %v481
        %v486 = vmax.f32 %v442, %v482
        %v487 = vmax.f32 %v443, %v483
        %492 = vrot.lane.b32.xlu0 %v484, 127
        %v493 = vpop.permute.xlu0 %492
        %494 = vrot.lane.b32.xlu0 %v485, 127
        %v495 = vpop.permute.xlu0 %494
        %496 = vrot.lane.b32.xlu0 %v486, 127
        %v497 = vpop.permute.xlu0 %496
        %498 = vrot.lane.b32.xlu0 %v487, 127
        %v499 = vpop.permute.xlu0 %498
        %v500 = vsel %vm390, %v493, %v495
        %v501 = vsel %vm390, %v497, %v499
        %v508 = vsel %vm390, %v495, %v493
        %v509 = vsel %vm390, %v499, %v497
        %v510 = vsel %vm403, %v500, -inf
        %v511 = vsel %vm404, %v508, -inf
        %v512 = vsel %vm403, %v501, -inf
        %v513 = vsel %vm404, %v509, -inf
        %514 = vrot.lane.b32.xlu0 %v485, 1
        %v515 = vpop.permute.xlu0 %514
        %516 = vrot.lane.b32.xlu0 %v487, 1
        %v517 = vpop.permute.xlu0 %516
        %520 = vrot.lane.b32.xlu0 %v484, 1
        %v521 = vpop.permute.xlu0 %520
        %522 = vrot.lane.b32.xlu0 %v486, 1
        %v523 = vpop.permute.xlu0 %522
        %v524 = vsel %vm419, %v521, %v515
        %v525 = vsel %vm419, %v523, %v517
        %v530 = vsel %vm419, %v515, %v521
        %v531 = vsel %vm419, %v517, %v523
        %v532 = vsel %vm430, %v530, -inf
        %v533 = vsel %vm431, %v524, -inf
        %v534 = vsel %vm430, %v531, -inf
        %v535 = vsel %vm431, %v525, -inf
        %v536 = vmax.f32 %v510, %v532
        %v537 = vmax.f32 %v511, %v533
        %v538 = vmax.f32 %v512, %v534
        %v539 = vmax.f32 %v513, %v535
        %v540 = vmax.f32 %v484, %v536
        %v541 = vmax.f32 %v485, %v537
        %v542 = vmax.f32 %v486, %v538
        %v543 = vmax.f32 %v487, %v539
        %548 = vrot.lane.b32.xlu0 %v540, 112
        %v549 = vpop.permute.xlu0 %548
        %550 = vrot.lane.b32.xlu0 %v541, 112
        %v551 = vpop.permute.xlu0 %550
        %552 = vrot.lane.b32.xlu0 %v542, 112
        %v553 = vpop.permute.xlu0 %552
        %554 = vrot.lane.b32.xlu0 %v543, 112
        %v555 = vpop.permute.xlu0 %554
        %v556 = vsel %vm344, %v549, %v551
        %v557 = vsel %vm344, %v553, %v555
        %v562 = vsel %vm344, %v551, -inf
        %v563 = vsel %vm344, %v555, -inf
        %564 = vrot.lane.b32.xlu0 %v540, 16
        %v565 = vpop.permute.xlu0 %564
        %566 = vrot.lane.b32.xlu0 %v541, 16
        %v567 = vpop.permute.xlu0 %566
        %568 = vrot.lane.b32.xlu0 %v542, 16
        %v569 = vpop.permute.xlu0 %568
        %570 = vrot.lane.b32.xlu0 %v543, 16
        %v571 = vpop.permute.xlu0 %570
        %v572 = vsel %vm361, %v565, %v567
        %v573 = vsel %vm361, %v569, %v571
        %v578 = vsel %vm361, -inf, %v565
        %v579 = vsel %vm361, -inf, %v569
        %v580 = vmax.f32 %v556, %v578
        %v581 = vmax.f32 %v562, %v572
        %v582 = vmax.f32 %v557, %v579
        %v583 = vmax.f32 %v563, %v573
        %v584 = vmax.f32 %v540, %v580
        %v585 = vmax.f32 %v541, %v581
        %v586 = vmax.f32 %v542, %v582
        %v587 = vmax.f32 %v543, %v583
        %592 = vrot.lane.b32.xlu0 %v584, 127
        %v593 = vpop.permute.xlu0 %592
        %594 = vrot.lane.b32.xlu0 %v585, 127
        %v595 = vpop.permute.xlu0 %594
        %596 = vrot.lane.b32.xlu0 %v586, 127
        %v597 = vpop.permute.xlu0 %596
        %598 = vrot.lane.b32.xlu0 %v587, 127
        %v599 = vpop.permute.xlu0 %598
        %v600 = vsel %vm390, %v593, %v595
        %v601 = vsel %vm390, %v597, %v599
        %v608 = vsel %vm390, %v595, %v593
        %v609 = vsel %vm390, %v599, %v597
        %v610 = vsel %vm403, %v600, -inf
        %v611 = vsel %vm404, %v608, -inf
        %v612 = vsel %vm403, %v601, -inf
        %v613 = vsel %vm404, %v609, -inf
        %614 = vrot.lane.b32.xlu0 %v585, 1
        %v615 = vpop.permute.xlu0 %614
        %616 = vrot.lane.b32.xlu0 %v587, 1
        %v617 = vpop.permute.xlu0 %616
        %620 = vrot.lane.b32.xlu0 %v584, 1
        %v621 = vpop.permute.xlu0 %620
        %622 = vrot.lane.b32.xlu0 %v586, 1
        %v623 = vpop.permute.xlu0 %622
        %v624 = vsel %vm419, %v621, %v615
        %v625 = vsel %vm419, %v623, %v617
        %v630 = vsel %vm419, %v615, %v621
        %v631 = vsel %vm419, %v617, %v623
        %v632 = vsel %vm430, %v630, -inf
        %v633 = vsel %vm431, %v624, -inf
        %v634 = vsel %vm430, %v631, -inf
        %v635 = vsel %vm431, %v625, -inf
        %v636 = vmax.f32 %v610, %v632
        %v637 = vmax.f32 %v611, %v633
        %v638 = vmax.f32 %v612, %v634
        %v639 = vmax.f32 %v613, %v635
        %v640 = vmax.f32 %v584, %v636
        %v641 = vmax.f32 %v585, %v637
        %v642 = vmax.f32 %v586, %v638
        %v643 = vmax.f32 %v587, %v639
        %v644 = vld [vmem:[%s2] sm:$0xff]
        %v645 = vld [vmem:[%s2 + $0x8] sm:$0xff]
        %648 = vrot.lane.b32.xlu0 %v644, 112
        %v649 = vpop.permute.xlu0 %648
        %650 = vrot.lane.b32.xlu0 %v645, 112
        %v651 = vpop.permute.xlu0 %650
        %652 = vrot.lane.b32.xlu0 %v440, 80
        %v653 = vpop.permute.xlu0 %652
        %654 = vrot.lane.b32.xlu0 %v441, 80
        %v655 = vpop.permute.xlu0 %654
        %656 = vrot.lane.b32.xlu0 %v442, 80
        %v657 = vpop.permute.xlu0 %656
        %658 = vrot.lane.b32.xlu0 %v443, 80
        %v659 = vpop.permute.xlu0 %658
        %vm660 = vcmask 654336
        %v661 = vsel %vm660, %v653, %v655
        %v662 = vsel %vm660, %v657, %v659
        %v665 = vsel %vm361, %v649, 0
        %v667 = vsel %vm361, %v651, 0
        %669 = vmatpush.msra.mxu0 0.0
        %670 = vmatpush.msra.mxu0 0.0
        %671 = vmatpush.msra.mxu0 0.0
        %672 = vmatpush.msra.mxu0 0.0
        %673 = vmatpush.msra.mxu0 0.0
        %674 = vmatpush.msra.mxu0 0.0
        %675 = vmatpush.msra.mxu0 0.0
        %676 = vmatpush.msra.mxu0 0.0
        %677 = vmatpush.msra.mxu0 0.0
        %678 = vmatpush.msra.mxu0 0.0
        %679 = vmatpush.msra.mxu0 0.0
        %680 = vmatpush.msra.mxu0 0.0
        %681 = vmatpush.msra.mxu0 0.0
        %682 = vmatpush.msra.mxu0 0.0
        %683 = vmatpush.msra.mxu0 %v662
        %684 = vmatpush.msra.mxu0 %v661
        %685 = vmatmul.f32.gmra.mxu0 %v665
        %v686 = vpop.f32.mrf.mxu0
        %v687 = vadd.f32 0.0, %v686
        %688 = vmatmul.f32.gmra.mxu0 %v667
        %v689 = vpop.f32.mrf.mxu0
        %v690 = vadd.f32 0.0, %v689
        %691 = vdwg.mxu0
        %v692 = vsel %vm361, %v644, 0
        %v694 = vsel %vm361, %v645, 0
        %696 = vmatpush.msra.mxu0 0.0
        %697 = vmatpush.msra.mxu0 0.0
        %698 = vmatpush.msra.mxu0 0.0
        %699 = vmatpush.msra.mxu0 0.0
        %700 = vmatpush.msra.mxu0 0.0
        %701 = vmatpush.msra.mxu0 0.0
        %702 = vmatpush.msra.mxu0 0.0
        %703 = vmatpush.msra.mxu0 0.0
        %704 = vmatpush.msra.mxu0 0.0
        %705 = vmatpush.msra.mxu0 0.0
        %706 = vmatpush.msra.mxu0 0.0
        %707 = vmatpush.msra.mxu0 0.0
        %708 = vmatpush.msra.mxu0 0.0
        %709 = vmatpush.msra.mxu0 0.0
        %710 = vmatpush.msra.mxu0 %v282
        %711 = vmatpush.msra.mxu0 %v281
        %712 = vmatmul.f32.gmra.mxu0 %v692
        %v713 = vpop.f32.mrf.mxu0
        %v714 = vadd.f32 %v687, %v713
        %715 = vmatmul.f32.gmra.mxu0 %v694
        %v716 = vpop.f32.mrf.mxu0
        %v717 = vadd.f32 %v690, %v716
        %718 = vdwg.mxu0
        %719 = vrot.lane.b32.xlu0 %v644, 96
        %v720 = vpop.permute.xlu0 %719
        %721 = vrot.lane.b32.xlu0 %v645, 96
        %v722 = vpop.permute.xlu0 %721
        %723 = vrot.lane.b32.xlu0 %v540, 80
        %v724 = vpop.permute.xlu0 %723
        %725 = vrot.lane.b32.xlu0 %v541, 80
        %v726 = vpop.permute.xlu0 %725
        %727 = vrot.lane.b32.xlu0 %v542, 80
        %v728 = vpop.permute.xlu0 %727
        %729 = vrot.lane.b32.xlu0 %v543, 80
        %v730 = vpop.permute.xlu0 %729
        %v731 = vsel %vm660, %v724, %v726
        %v732 = vsel %vm660, %v728, %v730
        %v735 = vsel %vm361, %v720, 0
        %v737 = vsel %vm361, %v722, 0
        %739 = vmatpush.msra.mxu0 0.0
        %740 = vmatpush.msra.mxu0 0.0
        %741 = vmatpush.msra.mxu0 0.0
        %742 = vmatpush.msra.mxu0 0.0
        %743 = vmatpush.msra.mxu0 0.0
        %744 = vmatpush.msra.mxu0 0.0
        %745 = vmatpush.msra.mxu0 0.0
        %746 = vmatpush.msra.mxu0 0.0
        %747 = vmatpush.msra.mxu0 0.0
        %748 = vmatpush.msra.mxu0 0.0
        %749 = vmatpush.msra.mxu0 0.0
        %750 = vmatpush.msra.mxu0 0.0
        %751 = vmatpush.msra.mxu0 0.0
        %752 = vmatpush.msra.mxu0 0.0
        %753 = vmatpush.msra.mxu0 %v732
        %754 = vmatpush.msra.mxu0 %v731
        %755 = vmatmul.f32.gmra.mxu0 %v735
        %v756 = vpop.f32.mrf.mxu0
        %v757 = vadd.f32 0.0, %v756
        %758 = vmatmul.f32.gmra.mxu0 %v737
        %v759 = vpop.f32.mrf.mxu0
        %v760 = vadd.f32 0.0, %v759
        %761 = vdwg.mxu0
        %v762 = vadd.f32 %v714, %v757
        %v763 = vadd.f32 %v717, %v760
        %764 = vrot.lane.b32.xlu0 %v644, 80
        %v765 = vpop.permute.xlu0 %764
        %766 = vrot.lane.b32.xlu0 %v645, 80
        %v767 = vpop.permute.xlu0 %766
        %772 = vrot.lane.b32.xlu0 %v640, 80
        %v773 = vpop.permute.xlu0 %772
        %774 = vrot.lane.b32.xlu0 %v641, 80
        %v775 = vpop.permute.xlu0 %774
        %776 = vrot.lane.b32.xlu0 %v642, 80
        %v777 = vpop.permute.xlu0 %776
        %778 = vrot.lane.b32.xlu0 %v643, 80
        %v779 = vpop.permute.xlu0 %778
        %v780 = vsel %vm660, %v773, %v775
        %v781 = vsel %vm660, %v777, %v779
        %v784 = vsel %vm361, %v765, 0
        %v786 = vsel %vm361, %v767, 0
        %788 = vmatpush.msra.mxu0 0.0
        %789 = vmatpush.msra.mxu0 0.0
        %790 = vmatpush.msra.mxu0 0.0
        %791 = vmatpush.msra.mxu0 0.0
        %792 = vmatpush.msra.mxu0 0.0
        %793 = vmatpush.msra.mxu0 0.0
        %794 = vmatpush.msra.mxu0 0.0
        %795 = vmatpush.msra.mxu0 0.0
        %796 = vmatpush.msra.mxu0 0.0
        %797 = vmatpush.msra.mxu0 0.0
        %798 = vmatpush.msra.mxu0 0.0
        %799 = vmatpush.msra.mxu0 0.0
        %800 = vmatpush.msra.mxu0 0.0
        %801 = vmatpush.msra.mxu0 0.0
        %802 = vmatpush.msra.mxu0 %v781
        %803 = vmatpush.msra.mxu0 %v780
        %804 = vmatmul.f32.gmra.mxu0 %v784
        %v805 = vpop.f32.mrf.mxu0
        %v806 = vadd.f32 0.0, %v805
        %807 = vmatmul.f32.gmra.mxu0 %v786
        %v808 = vpop.f32.mrf.mxu0
        %v809 = vadd.f32 0.0, %v808
        %810 = vdwg.mxu0
        %v811 = vadd.f32 %v762, %v806
        %v812 = vadd.f32 %v763, %v809
        %v813 = vld [vmem:[%s3] sm:$0xff]
        %v814 = vld [vmem:[%s3 + $0x8] sm:$0xff]
        %816 = vset.pattern.permute.xlu0 0
        %817 = vperm.xlu0 %816, %v813
        %v818 = vpop.permute.xlu0 %817
        %821 = vset.pattern.permute.xlu0 0
        %822 = vperm.xlu0 %821, %v814
        %v823 = vpop.permute.xlu0 %822
        %v825 = vadd.f32 %v811, %v818
        %v826 = vadd.f32 %v812, %v823
        %v827 = vxor.u32 %v825, 2147483648
        %v828 = vxor.u32 %v826, 2147483648
        %v829 = vmul.f32 %v827, 1.442695
        %v830 = vpow.pop %v829
        %v831 = vmul.f32 %v828, 1.442695
        %v832 = vpow.pop %v831
        %v833 = vadd.f32 %v830, 1.0
        %v834 = vadd.f32 %v832, 1.0
        %v835 = vrcp.pop %v833
        %v836 = vmul.f32 %v833, %v835
        %v837 = vsub.f32 1.0, %v836
        %v838 = vmul.f32 %v835, %v837
        %v839 = vadd.f32 %v835, %v838
        %vm840 = vweird.f32 %v833
        %vm841 = vweird.f32 %v835
        %vm842 = vmor %vm840, %vm841
        %v843 = vsel %vm842, %v835, %v839
        %v844 = vand.u32 2147483647, %v833
        %vm845 = vcmp.eq.f32.partialorder %v844, 8.507059e+37
        %v846 = vand.u32 %v833, 2147483648
        %v847 = vor.u32 1.1754944e-38, %v846
        %v848 = vsel %vm845, %v847, %v843
        %v849 = vmul.f32 1.0, %v848
        %v850 = vrcp.pop %v834
        %v851 = vmul.f32 %v834, %v850
        %v852 = vsub.f32 1.0, %v851
        %v853 = vmul.f32 %v850, %v852
        %v854 = vadd.f32 %v850, %v853
        %vm855 = vweird.f32 %v834
        %vm856 = vweird.f32 %v850
        %vm857 = vmor %vm855, %vm856
        %v858 = vsel %vm857, %v850, %v854
        %v859 = vand.u32 2147483647, %v834
        %vm860 = vcmp.eq.f32.partialorder %v859, 8.507059e+37
        %v861 = vand.u32 %v834, 2147483648
        %v862 = vor.u32 1.1754944e-38, %v861
        %v863 = vsel %vm860, %v862, %v858
        %v864 = vmul.f32 1.0, %v863
        %v865 = vmul.f32 %v825, %v849
        %v866 = vmul.f32 %v826, %v864
        %867 = vst [vmem:[%s280] sm:$0xff] %v865
        %868 = vst [vmem:[%s280 + $0x8] sm:$0xff] %v866
        %s869 = sand.u32 %s144, 1
        %s870 = scalar_lea.sflag [#allocation4], %s869
        %s871 = sand.u32 %s144, 1
        %s872 = smul.addr %s871, 16
        %s873 = scalar_lea.vmem [#allocation7], %s872
        // Predicated region
        $region45: #{tpu_custom_call.1} parent=35 // pred_check
          %p874 = pneg %p154
        $region46: #{tpu_custom_call.1} parent=35 // pred_check_branch
          %876 = sbr.rel (%p874) target = $region48
        $region47: #{tpu_custom_call.1} parent=35 // pred_region
          %878 = vsyncadd %s870, 0
          %s879 = smul.addr %s28, 4
          %s880 = sadd.s32 %s29, %s879
          %s881 = smul.addr %s880, 8
          %s882 = scalar_lea.hbm %s4, %s881
          %s883 = sshll.u32 %s873, 4
          %s884 = int_to_ptr.vmem [resolvable:$true] %s883
          %s885 = sshll.u32 %s882, 4
          %s886 = int_to_ptr.hbm [resolvable:$true] %s885
          %891 = dma.vmem_to_hbm [thread:$0]  %s884, 256, %s886, %s870, 128, 256, 8
        $region48: #{tpu_custom_call.1} parent=35 // pred_fallthru
          _
      $region36: #{tpu_custom_call.1} parent=5 // pred_fallthru
        _
      %p892 = scmp.le.s32.totalorder 2, %s19
      // Predicated region
      $region49: #{tpu_custom_call.1} parent=5 // pred_check
        %p893 = pneg %p892
      $region50: #{tpu_custom_call.1} parent=5 // pred_check_branch
        %895 = sbr.rel (%p893) target = $region52
      $region51: #{tpu_custom_call.1} parent=5 // pred_region
        %s896 = ssub.s32 %s19, 2
        // Predicated region
        $region53: #{tpu_custom_call.1} parent=51 // pred_check
          %p897 = pneg %p160
        $region54: #{tpu_custom_call.1} parent=51 // pred_check_branch
          %899 = sbr.rel (%p897) target = $region56
        $region55: #{tpu_custom_call.1} parent=51 // pred_region
          %s900 = sand.u32 %s145, 1
          %s901 = scalar_lea.sflag [#allocation4], %s900
          %s902 = sand.u32 %s145, 1
          %s903 = smul.addr %s902, 16
          %s904 = scalar_lea.vmem [#allocation7], %s903
          %906 = dma.done %s901, 256
        $region56: #{tpu_custom_call.1} parent=51 // pred_fallthru
          _
      $region52: #{tpu_custom_call.1} parent=5 // pred_fallthru
        _
    $region6: #{tpu_custom_call.1} parent=1 // loop_footer
      %s23 = sadd.s32 1, %s19
    $region7: #{tpu_custom_call.1} parent=1 // loop_footer_branch
      %18 = sbr.rel target = $region3
    $region8: #{tpu_custom_call.1} parent=1 // loop_exit
      _
    %907 = vsyncpa [#allocation3], 1
    %s908 = scalar_lea.sflag [#allocation3], 1
    %909 = vsyncpa %s908, 1
    %910 = vsyncpa [#allocation6], 1
    %s911 = scalar_lea.sflag [#allocation6], 1
    %912 = vsyncpa %s911, 1
    %913 = vsyncpa [#allocation4], 1
    %s914 = scalar_lea.sflag [#allocation4], 1
    %915 = vsyncpa %s914, 1

</llo_original>
